<compile_context>
chip_gen: v7x
topology: tpu7x:2x2x1
jax: 0.10.0
libtpu: 0.0.40
codegen_flags: <defaults>
</compile_context>

<pallas_src>
import functools

import jax
import jax.numpy as jnp
from jax.experimental import pallas as pl
from jax.experimental.pallas import tpu as pltpu

EPS = 1e-5
K = 3  # kernel_size = 3, stride = 1, padding = 1

_VMEM = pl.BlockSpec(memory_space=pltpu.MemorySpace.VMEM)


def _res_block_kernel(x_ref, b1_ref, b2_ref, p1_ref, p2_ref,
                      g1_ref, be1_ref, g2_ref, be2_ref,
                      out_ref, xpad_ref, ypad_ref, *, n, h, w):
    """Fused ResidualBlock forward.

    Layouts (lane-dense, (w, channel) flattened on the lane axis):
      x_ref    : (N, H, W*Cin)       f32  input
      b1_ref   : (3, W*Cin, W*Cout)  mxu  banded conv1 weights (one slab per dy tap)
      b2_ref   : (3, W*Cout, W*Cin)  mxu  banded conv2 weights
      p1_ref   : (W*Cout, W*Cout)    f32  0/1 same-channel pooling matrix
      p2_ref   : (W*Cin,  W*Cin)     f32
      g*/be*   : (1, W*C)            f32  BN gamma/beta pre-tiled to the lane layout
      out_ref  : (N*H, W*Cin)        f32
      xpad_ref : (N, H+2, W*Cin)     mxu  scratch: input with H halo
      ypad_ref : (N, H+2, W*Cout)    mxu  scratch: conv1 output with H halo (never hits HBM)
    """
    wcin = x_ref.shape[-1]
    wcout = ypad_ref.shape[-1]
    inv_m = 1.0 / float(n * h * w)  # BN element count per channel

    def conv(pad_ref, b_ref):
        # 3x3 conv as 3 banded MXU matmuls; dx taps + the W dim are folded into the
        # contraction depth; W zero-padding is baked into the band structure.
        lanes_in = pad_ref.shape[-1]
        acc = None
        for dy in range(K):
            lhs = pad_ref[:, pl.ds(dy, h), :].reshape(n * h, lanes_in)
            part = jnp.dot(lhs, b_ref[dy], preferred_element_type=jnp.float32)
            acc = part if acc is None else acc + part
        return acc  # (n*h, lanes_out) f32  (conv bias omitted: cancelled by BN mean)

    def batchnorm(acc, p_ref, g_ref, be_ref):
        # Training-mode BN (biased variance) over (N, H, W) per channel.
        # acc @ P sums over all lanes belonging to the same channel, staying lane-dense.
        mean = jnp.sum(jnp.dot(acc, p_ref[...], preferred_element_type=jnp.float32),
                       axis=0, keepdims=True) * inv_m
        cen = acc - mean
        var = jnp.sum(jnp.dot(cen * cen, p_ref[...], preferred_element_type=jnp.float32),
                      axis=0, keepdims=True) * inv_m
        return cen * (g_ref[...] * jax.lax.rsqrt(var + EPS)) + be_ref[...]

    # Stage the input with its H halo in VMEM (replaces wrapper-side jnp.pad / extra HBM pass).
    xpad_ref[...] = jnp.zeros_like(xpad_ref)
    xpad_ref[:, pl.ds(1, h), :] = x_ref[...].astype(xpad_ref.dtype)

    # conv1 + BN + ReLU
    y = jnp.maximum(batchnorm(conv(xpad_ref, b1_ref), p1_ref, g1_ref, be1_ref), 0.0)

    # Stage y (+ H halo) in VMEM scratch; the intermediate never touches HBM.
    ypad_ref[...] = jnp.zeros_like(ypad_ref)
    ypad_ref[:, pl.ds(1, h), :] = y.reshape(n, h, wcout).astype(ypad_ref.dtype)

    # conv2 + BN, residual add, ReLU
    z = batchnorm(conv(ypad_ref, b2_ref), p2_ref, g2_ref, be2_ref)
    res = x_ref[...].reshape(n * h, wcin)
    out_ref[...] = jnp.maximum(z + res, 0.0)


def _banded_weights(w, width):
    """(K*K, Cin, Cout) conv weights -> (K, width*Cin, width*Cout) banded matmul weights.

    B[dy, wi*Cin + ci, wo*Cout + co] = w[dy*K + dx, ci, co] with wi = wo + dx - 1; entries with
    wi outside [0, width) are dropped -- this *is* the zero padding along W.
    """
    _, cin, cout = w.shape
    wk = w.reshape(K, K, cin, cout)
    b = jnp.zeros((K, width * cin, width * cout), jnp.float32)
    for dx in range(K):
        for wo in range(width):
            wi = wo + dx - 1
            if 0 <= wi < width:
                b = b.at[:, wi * cin:(wi + 1) * cin,
                         wo * cout:(wo + 1) * cout].set(wk[:, dx])
    return b


def _channel_pool_matrix(width, c):
    """P[(w*c + i), (w'*c + j)] = 1.0 iff i == j (per-channel sum in the lane-flat layout)."""
    lane_chan = jnp.arange(width * c) % c
    return (lane_chan[:, None] == lane_chan[None, :]).astype(jnp.float32)


def _tile_lane(v, width):
    """Per-channel vector (C,)/(1,C) -> (1, width*C), tiled to the lane-flat (w, c) layout."""
    return jnp.tile(v.reshape(-1), width).reshape(1, -1).astype(jnp.float32)


@functools.partial(jax.jit, static_argnames=("mxu_dtype",))
def residual_block(x_nchw, w1, b1, g1, be1, w2, b2, g2, be2, *, mxu_dtype=jnp.float32):
    """x_nchw: (N, C_in, H, W) -> (N, C_in, H, W).

    b1/b2 (conv biases) are accepted for interface parity but are mathematically cancelled by
    training-mode BatchNorm, so they are not sent to the kernel. Use mxu_dtype=jnp.bfloat16 on
    v5e/v6e/v7x for ~2x MXU throughput (BN / ReLU / residual stay in f32).
    """
    del b1, b2
    n, cin, hh, ww = x_nchw.shape
    cout = w1.shape[-1]

    # NCHW -> NHWC -> (N, H, W*Cin): channels-last so (w, c) flattens onto the lane axis.
    # TODO(synk): accept/return NHWC directly to drop these two XLA transpose passes.
    x = jnp.transpose(x_nchw, (0, 2, 3, 1)).astype(jnp.float32).reshape(n, hh, ww * cin)

    b1m = _banded_weights(w1.astype(jnp.float32), ww).astype(mxu_dtype)
    b2m = _banded_weights(w2.astype(jnp.float32), ww).astype(mxu_dtype)
    p1 = _channel_pool_matrix(ww, cout)
    p2 = _channel_pool_matrix(ww, cin)
    g1t, be1t = _tile_lane(g1, ww), _tile_lane(be1, ww)
    g2t, be2t = _tile_lane(g2, ww), _tile_lane(be2, ww)

    kernel = functools.partial(_res_block_kernel, n=n, h=hh, w=ww)
    out2d = pl.pallas_call(
        kernel,
        out_shape=jax.ShapeDtypeStruct((n * hh, ww * cin), jnp.float32),
        in_specs=[_VMEM] * 9,
        out_specs=_VMEM,
        scratch_shapes=[
            pltpu.VMEM((n, hh + 2, ww * cin), mxu_dtype),   # x + H halo
            pltpu.VMEM((n, hh + 2, ww * cout), mxu_dtype),  # conv1 output + H halo
        ],
        # TODO(synk): for large N*H (and v7x's 64 MiB VMEM / 2 TensorCores) add a grid over row
        # tiles with dimension_semantics=("parallel",) plus a two-phase BN reduction; this test
        # size fits whole-array in VMEM.
    )(x, b1m, b2m, p1, p2, g1t, be1t, g2t, be2t)

    return jnp.transpose(out2d.reshape(n, hh, ww, cin), (0, 3, 1, 2))


def _reference(x_nchw, w1, b1, g1, be1, w2, b2, g2, be2):
    """Pure-JAX reference of the PyTorch forward (training-mode BN)."""
    x = jnp.transpose(x_nchw, (0, 2, 3, 1)).astype(jnp.float32)

    def conv_bn(inp, w, b, g, be):
        cin, cout = w.shape[1], w.shape[2]
        wk = w.reshape(K, K, cin, cout)
        y = jax.lax.conv_general_dilated(
            inp, wk, (1, 1), ((1, 1), (1, 1)),
            dimension_numbers=("NHWC", "HWIO", "NHWC")) + b.reshape(1, 1, 1, -1)
        mean = jnp.mean(y, axis=(0, 1, 2), keepdims=True)
        var = jnp.mean((y - mean) ** 2, axis=(0, 1, 2), keepdims=True)
        return (y - mean) * g.reshape(1, 1, 1, -1) / jnp.sqrt(var + EPS) + be.reshape(1, 1, 1, -1)

    y = jax.nn.relu(conv_bn(x, w1, b1, g1, be1))
    z = conv_bn(y, w2, b2, g2, be2)
    return jnp.transpose(jax.nn.relu(x + z), (0, 3, 1, 2))


if __name__ == "__main__":
    key = jax.random.PRNGKey(0)
    N, Cin, Cout, H, W = 2, 4, 8, 16, 16

    ks = jax.random.split(key, 9)
    x = jax.random.normal(ks[0], (N, Cin, H, W), jnp.float32)

    # Conv weights stored as (K*K, Cin, Cout) = transposed/reshaped (Cout, Cin, K, K).
    w1 = 0.3 * jax.random.normal(ks[1], (K * K, Cin, Cout), jnp.float32)
    b1 = 0.1 * jax.random.normal(ks[2], (1, Cout), jnp.float32)
    g1 = 1.0 + 0.1 * jax.random.normal(ks[3], (1, Cout), jnp.float32)
    be1 = 0.1 * jax.random.normal(ks[4], (1, Cout), jnp.float32)

    w2 = 0.3 * jax.random.normal(ks[5], (K * K, Cout, Cin), jnp.float32)
    b2 = 0.1 * jax.random.normal(ks[6], (1, Cin), jnp.float32)
    g2 = 1.0 + 0.1 * jax.random.normal(ks[7], (1, Cin), jnp.float32)
    be2 = 0.1 * jax.random.normal(ks[8], (1, Cin), jnp.float32)

    ref = _reference(x, w1, b1, g1, be1, w2, b2, g2, be2)

    # Exact path (f32 MXU operands).
    out = jax.block_until_ready(residual_block(x, w1, b1, g1, be1, w2, b2, g2, be2))
    assert out.shape == (N, Cin, H, W), out.shape
    err = float(jnp.max(jnp.abs(out - ref)))
    assert err < 1e-2, f"f32 path mismatch vs reference: {err}"

    # bf16 MXU-operand path (recommended on v5e/v6e/v7x). Loose sanity bound only, since the
    # reference is f32 and bf16 operand rounding is expected.
    out_bf16 = jax.block_until_ready(
        residual_block(x, w1, b1, g1, be1, w2, b2, g2, be2, mxu_dtype=jnp.bfloat16))
    err_bf16 = float(jnp.max(jnp.abs(out_bf16 - ref)))
    assert err_bf16 < 0.25, f"bf16 path mismatch vs reference: {err_bf16}"

    print("KERNEL_OK")
</pallas_src>

<mosaic_0001>
module attributes {stable_mosaic.version = 11 : i64} {
  func.func @_res_block_kernel(%arg0: memref<2x16x64xf32, #tpu.memory_space<vmem>>, %arg1: memref<3x64x128xf32, #tpu.memory_space<vmem>>, %arg2: memref<3x128x64xf32, #tpu.memory_space<vmem>>, %arg3: memref<128x128xf32, #tpu.memory_space<vmem>>, %arg4: memref<64x64xf32, #tpu.memory_space<vmem>>, %arg5: memref<1x128xf32, #tpu.memory_space<vmem>>, %arg6: memref<1x128xf32, #tpu.memory_space<vmem>>, %arg7: memref<1x64xf32, #tpu.memory_space<vmem>>, %arg8: memref<1x64xf32, #tpu.memory_space<vmem>>, %arg9: memref<32x64xf32, #tpu.memory_space<vmem>>, %arg10: memref<2x18x64xf32, #tpu.memory_space<vmem>>, %arg11: memref<2x18x128xf32, #tpu.memory_space<vmem>>) attributes {dimension_semantics = [], scalar_prefetch = 0 : i64, scratch_operands = 2 : i64, tpu.core_type = #tpu.core_type<tc>} {
    %cst = arith.constant 0.000000e+00 : f32
    %0 = vector.broadcast %cst : f32 to vector<2x18x64xf32>
    %c0 = arith.constant 0 : index
    %c0_0 = arith.constant 0 : index
    %c0_1 = arith.constant 0 : index
    %1 = vector.load %arg10[%c0, %c0_0, %c0_1] : memref<2x18x64xf32, #tpu.memory_space<vmem>>, vector<2x18x64xf32>
    tpu.vector_store %arg10[%c0, %c0_0, %c0_1], %0 {strides = array<i32>} : memref<2x18x64xf32, #tpu.memory_space<vmem>>, vector<2x18x64xf32>,
    %c0_2 = arith.constant 0 : index
    %c0_3 = arith.constant 0 : index
    %c0_4 = arith.constant 0 : index
    %2 = vector.load %arg0[%c0_2, %c0_3, %c0_4] : memref<2x16x64xf32, #tpu.memory_space<vmem>>, vector<2x16x64xf32>
    %c0_5 = arith.constant 0 : index
    %c1 = arith.constant 1 : index
    %c0_6 = arith.constant 0 : index
    %3 = vector.load %arg10[%c0_5, %c1, %c0_6] : memref<2x18x64xf32, #tpu.memory_space<vmem>>, vector<2x16x64xf32>
    tpu.vector_store %arg10[%c0_5, %c1, %c0_6], %2 {strides = array<i32>} : memref<2x18x64xf32, #tpu.memory_space<vmem>>, vector<2x16x64xf32>,
    %c0_7 = arith.constant 0 : index
    %c0_8 = arith.constant 0 : index
    %c0_9 = arith.constant 0 : index
    %4 = vector.load %arg10[%c0_7, %c0_8, %c0_9] : memref<2x18x64xf32, #tpu.memory_space<vmem>>, vector<2x16x64xf32>
    %5 = vector.shape_cast %4 : vector<2x16x64xf32> to vector<32x64xf32>
    %c0_10 = arith.constant 0 : index
    %c0_11 = arith.constant 0 : index
    %c0_12 = arith.constant 0 : index
    %6 = vector.load %arg1[%c0_10, %c0_11, %c0_12] : memref<3x64x128xf32, #tpu.memory_space<vmem>>, vector<1x64x128xf32>
    %7 = vector.shape_cast %6 : vector<1x64x128xf32> to vector<64x128xf32>
    %cst_13 = arith.constant dense<0.000000e+00> : vector<32x128xf32>
    %8 = tpu.matmul %5, %7, %cst_13 {dimension_numbers = #tpu.dot_dimension_numbers<[1], [0], [0], [1], [0, 0, 1, 1], [], []>} : vector<32x64xf32>, vector<64x128xf32>, vector<32x128xf32> -> vector<32x128xf32>
    %c0_14 = arith.constant 0 : index
    %c1_15 = arith.constant 1 : index
    %c0_16 = arith.constant 0 : index
    %9 = vector.load %arg10[%c0_14, %c1_15, %c0_16] : memref<2x18x64xf32, #tpu.memory_space<vmem>>, vector<2x16x64xf32>
    %10 = vector.shape_cast %9 : vector<2x16x64xf32> to vector<32x64xf32>
    %c1_17 = arith.constant 1 : index
    %c0_18 = arith.constant 0 : index
    %c0_19 = arith.constant 0 : index
    %11 = vector.load %arg1[%c1_17, %c0_18, %c0_19] : memref<3x64x128xf32, #tpu.memory_space<vmem>>, vector<1x64x128xf32>
    %12 = vector.shape_cast %11 : vector<1x64x128xf32> to vector<64x128xf32>
    %cst_20 = arith.constant dense<0.000000e+00> : vector<32x128xf32>
    %13 = tpu.matmul %10, %12, %cst_20 {dimension_numbers = #tpu.dot_dimension_numbers<[1], [0], [0], [1], [0, 0, 1, 1], [], []>} : vector<32x64xf32>, vector<64x128xf32>, vector<32x128xf32> -> vector<32x128xf32>
    %14 = arith.addf %8, %13 : vector<32x128xf32>
    %c0_21 = arith.constant 0 : index
    %c2 = arith.constant 2 : index
    %c0_22 = arith.constant 0 : index
    %15 = vector.load %arg10[%c0_21, %c2, %c0_22] : memref<2x18x64xf32, #tpu.memory_space<vmem>>, vector<2x16x64xf32>
    %16 = vector.shape_cast %15 : vector<2x16x64xf32> to vector<32x64xf32>
    %c2_23 = arith.constant 2 : index
    %c0_24 = arith.constant 0 : index
    %c0_25 = arith.constant 0 : index
    %17 = vector.load %arg1[%c2_23, %c0_24, %c0_25] : memref<3x64x128xf32, #tpu.memory_space<vmem>>, vector<1x64x128xf32>
    %18 = vector.shape_cast %17 : vector<1x64x128xf32> to vector<64x128xf32>
    %cst_26 = arith.constant dense<0.000000e+00> : vector<32x128xf32>
    %19 = tpu.matmul %16, %18, %cst_26 {dimension_numbers = #tpu.dot_dimension_numbers<[1], [0], [0], [1], [0, 0, 1, 1], [], []>} : vector<32x64xf32>, vector<64x128xf32>, vector<32x128xf32> -> vector<32x128xf32>
    %20 = arith.addf %14, %19 : vector<32x128xf32>
    %c0_27 = arith.constant 0 : index
    %c0_28 = arith.constant 0 : index
    %21 = vector.load %arg3[%c0_27, %c0_28] : memref<128x128xf32, #tpu.memory_space<vmem>>, vector<128x128xf32>
    %cst_29 = arith.constant dense<0.000000e+00> : vector<32x128xf32>
    %22 = tpu.matmul %20, %21, %cst_29 {dimension_numbers = #tpu.dot_dimension_numbers<[1], [0], [0], [1], [0, 0, 1, 1], [], []>} : vector<32x128xf32>, vector<128x128xf32>, vector<32x128xf32> -> vector<32x128xf32>
    %cst_30 = arith.constant dense<0.000000e+00> : vector<128xf32>
    %23 = vector.multi_reduction <add>, %22, %cst_30 [0] : vector<32x128xf32> to vector<128xf32>
    %24 = vector.shape_cast %23 : vector<128xf32> to vector<1x128xf32>
    %cst_31 = arith.constant 0.001953125 : f32
    %25 = vector.broadcast %cst_31 : f32 to vector<1x128xf32>
    %26 = arith.mulf %24, %25 : vector<1x128xf32>
    %27 = vector.broadcast %26 : vector<1x128xf32> to vector<32x128xf32>
    %28 = arith.subf %20, %27 : vector<32x128xf32>
    %29 = arith.mulf %28, %28 : vector<32x128xf32>
    %c0_32 = arith.constant 0 : index
    %c0_33 = arith.constant 0 : index
    %30 = vector.load %arg3[%c0_32, %c0_33] : memref<128x128xf32, #tpu.memory_space<vmem>>, vector<128x128xf32>
    %cst_34 = arith.constant dense<0.000000e+00> : vector<32x128xf32>
    %31 = tpu.matmul %29, %30, %cst_34 {dimension_numbers = #tpu.dot_dimension_numbers<[1], [0], [0], [1], [0, 0, 1, 1], [], []>} : vector<32x128xf32>, vector<128x128xf32>, vector<32x128xf32> -> vector<32x128xf32>
    %cst_35 = arith.constant dense<0.000000e+00> : vector<128xf32>
    %32 = vector.multi_reduction <add>, %31, %cst_35 [0] : vector<32x128xf32> to vector<128xf32>
    %33 = vector.shape_cast %32 : vector<128xf32> to vector<1x128xf32>
    %cst_36 = arith.constant 0.001953125 : f32
    %34 = vector.broadcast %cst_36 : f32 to vector<1x128xf32>
    %35 = arith.mulf %33, %34 : vector<1x128xf32>
    %c0_37 = arith.constant 0 : index
    %c0_38 = arith.constant 0 : index
    %36 = vector.load %arg5[%c0_37, %c0_38] : memref<1x128xf32, #tpu.memory_space<vmem>>, vector<1x128xf32>
    %cst_39 = arith.constant 9.99999974E-6 : f32
    %37 = vector.broadcast %cst_39 : f32 to vector<1x128xf32>
    %38 = arith.addf %35, %37 : vector<1x128xf32>
    %39 = math.rsqrt %38 : vector<1x128xf32>
    %40 = arith.mulf %36, %39 : vector<1x128xf32>
    %41 = vector.broadcast %40 : vector<1x128xf32> to vector<32x128xf32>
    %42 = arith.mulf %28, %41 : vector<32x128xf32>
    %c0_40 = arith.constant 0 : index
    %c0_41 = arith.constant 0 : index
    %43 = vector.load %arg6[%c0_40, %c0_41] : memref<1x128xf32, #tpu.memory_space<vmem>>, vector<1x128xf32>
    %44 = vector.broadcast %43 : vector<1x128xf32> to vector<32x128xf32>
    %45 = arith.addf %42, %44 : vector<32x128xf32>
    %cst_42 = arith.constant 0.000000e+00 : f32
    %46 = vector.broadcast %cst_42 : f32 to vector<32x128xf32>
    %47 = arith.maximumf %45, %46 : vector<32x128xf32>
    %cst_43 = arith.constant 0.000000e+00 : f32
    %48 = vector.broadcast %cst_43 : f32 to vector<2x18x128xf32>
    %c0_44 = arith.constant 0 : index
    %c0_45 = arith.constant 0 : index
    %c0_46 = arith.constant 0 : index
    %49 = vector.load %arg11[%c0_44, %c0_45, %c0_46] : memref<2x18x128xf32, #tpu.memory_space<vmem>>, vector<2x18x128xf32>
    tpu.vector_store %arg11[%c0_44, %c0_45, %c0_46], %48 {strides = array<i32>} : memref<2x18x128xf32, #tpu.memory_space<vmem>>, vector<2x18x128xf32>,
    %50 = vector.shape_cast %47 : vector<32x128xf32> to vector<2x16x128xf32>
    %c0_47 = arith.constant 0 : index
    %c1_48 = arith.constant 1 : index
    %c0_49 = arith.constant 0 : index
    %51 = vector.load %arg11[%c0_47, %c1_48, %c0_49] : memref<2x18x128xf32, #tpu.memory_space<vmem>>, vector<2x16x128xf32>
    tpu.vector_store %arg11[%c0_47, %c1_48, %c0_49], %50 {strides = array<i32>} : memref<2x18x128xf32, #tpu.memory_space<vmem>>, vector<2x16x128xf32>,
    %c0_50 = arith.constant 0 : index
    %c0_51 = arith.constant 0 : index
    %c0_52 = arith.constant 0 : index
    %52 = vector.load %arg11[%c0_50, %c0_51, %c0_52] : memref<2x18x128xf32, #tpu.memory_space<vmem>>, vector<2x16x128xf32>
    %53 = vector.shape_cast %52 : vector<2x16x128xf32> to vector<32x128xf32>
    %c0_53 = arith.constant 0 : index
    %c0_54 = arith.constant 0 : index
    %c0_55 = arith.constant 0 : index
    %54 = vector.load %arg2[%c0_53, %c0_54, %c0_55] : memref<3x128x64xf32, #tpu.memory_space<vmem>>, vector<1x128x64xf32>
    %55 = vector.shape_cast %54 : vector<1x128x64xf32> to vector<128x64xf32>
    %cst_56 = arith.constant dense<0.000000e+00> : vector<32x64xf32>
    %56 = tpu.matmul %53, %55, %cst_56 {dimension_numbers = #tpu.dot_dimension_numbers<[1], [0], [0], [1], [0, 0, 1, 1], [], []>} : vector<32x128xf32>, vector<128x64xf32>, vector<32x64xf32> -> vector<32x64xf32>
    %c0_57 = arith.constant 0 : index
    %c1_58 = arith.constant 1 : index
    %c0_59 = arith.constant 0 : index
    %57 = vector.load %arg11[%c0_57, %c1_58, %c0_59] : memref<2x18x128xf32, #tpu.memory_space<vmem>>, vector<2x16x128xf32>
    %58 = vector.shape_cast %57 : vector<2x16x128xf32> to vector<32x128xf32>
    %c1_60 = arith.constant 1 : index
    %c0_61 = arith.constant 0 : index
    %c0_62 = arith.constant 0 : index
    %59 = vector.load %arg2[%c1_60, %c0_61, %c0_62] : memref<3x128x64xf32, #tpu.memory_space<vmem>>, vector<1x128x64xf32>
    %60 = vector.shape_cast %59 : vector<1x128x64xf32> to vector<128x64xf32>
    %cst_63 = arith.constant dense<0.000000e+00> : vector<32x64xf32>
    %61 = tpu.matmul %58, %60, %cst_63 {dimension_numbers = #tpu.dot_dimension_numbers<[1], [0], [0], [1], [0, 0, 1, 1], [], []>} : vector<32x128xf32>, vector<128x64xf32>, vector<32x64xf32> -> vector<32x64xf32>
    %62 = arith.addf %56, %61 : vector<32x64xf32>
    %c0_64 = arith.constant 0 : index
    %c2_65 = arith.constant 2 : index
    %c0_66 = arith.constant 0 : index
    %63 = vector.load %arg11[%c0_64, %c2_65, %c0_66] : memref<2x18x128xf32, #tpu.memory_space<vmem>>, vector<2x16x128xf32>
    %64 = vector.shape_cast %63 : vector<2x16x128xf32> to vector<32x128xf32>
    %c2_67 = arith.constant 2 : index
    %c0_68 = arith.constant 0 : index
    %c0_69 = arith.constant 0 : index
    %65 = vector.load %arg2[%c2_67, %c0_68, %c0_69] : memref<3x128x64xf32, #tpu.memory_space<vmem>>, vector<1x128x64xf32>
    %66 = vector.shape_cast %65 : vector<1x128x64xf32> to vector<128x64xf32>
    %cst_70 = arith.constant dense<0.000000e+00> : vector<32x64xf32>
    %67 = tpu.matmul %64, %66, %cst_70 {dimension_numbers = #tpu.dot_dimension_numbers<[1], [0], [0], [1], [0, 0, 1, 1], [], []>} : vector<32x128xf32>, vector<128x64xf32>, vector<32x64xf32> -> vector<32x64xf32>
    %68 = arith.addf %62, %67 : vector<32x64xf32>
    %c0_71 = arith.constant 0 : index
    %c0_72 = arith.constant 0 : index
    %69 = vector.load %arg4[%c0_71, %c0_72] : memref<64x64xf32, #tpu.memory_space<vmem>>, vector<64x64xf32>
    %cst_73 = arith.constant dense<0.000000e+00> : vector<32x64xf32>
    %70 = tpu.matmul %68, %69, %cst_73 {dimension_numbers = #tpu.dot_dimension_numbers<[1], [0], [0], [1], [0, 0, 1, 1], [], []>} : vector<32x64xf32>, vector<64x64xf32>, vector<32x64xf32> -> vector<32x64xf32>
    %cst_74 = arith.constant dense<0.000000e+00> : vector<64xf32>
    %71 = vector.multi_reduction <add>, %70, %cst_74 [0] : vector<32x64xf32> to vector<64xf32>
    %72 = vector.shape_cast %71 : vector<64xf32> to vector<1x64xf32>
    %cst_75 = arith.constant 0.001953125 : f32
    %73 = vector.broadcast %cst_75 : f32 to vector<1x64xf32>
    %74 = arith.mulf %72, %73 : vector<1x64xf32>
    %75 = vector.broadcast %74 : vector<1x64xf32> to vector<32x64xf32>
    %76 = arith.subf %68, %75 : vector<32x64xf32>
    %77 = arith.mulf %76, %76 : vector<32x64xf32>
    %c0_76 = arith.constant 0 : index
    %c0_77 = arith.constant 0 : index
    %78 = vector.load %arg4[%c0_76, %c0_77] : memref<64x64xf32, #tpu.memory_space<vmem>>, vector<64x64xf32>
    %cst_78 = arith.constant dense<0.000000e+00> : vector<32x64xf32>
    %79 = tpu.matmul %77, %78, %cst_78 {dimension_numbers = #tpu.dot_dimension_numbers<[1], [0], [0], [1], [0, 0, 1, 1], [], []>} : vector<32x64xf32>, vector<64x64xf32>, vector<32x64xf32> -> vector<32x64xf32>
    %cst_79 = arith.constant dense<0.000000e+00> : vector<64xf32>
    %80 = vector.multi_reduction <add>, %79, %cst_79 [0] : vector<32x64xf32> to vector<64xf32>
    %81 = vector.shape_cast %80 : vector<64xf32> to vector<1x64xf32>
    %cst_80 = arith.constant 0.001953125 : f32
    %82 = vector.broadcast %cst_80 : f32 to vector<1x64xf32>
    %83 = arith.mulf %81, %82 : vector<1x64xf32>
    %c0_81 = arith.constant 0 : index
    %c0_82 = arith.constant 0 : index
    %84 = vector.load %arg7[%c0_81, %c0_82] : memref<1x64xf32, #tpu.memory_space<vmem>>, vector<1x64xf32>
    %cst_83 = arith.constant 9.99999974E-6 : f32
    %85 = vector.broadcast %cst_83 : f32 to vector<1x64xf32>
    %86 = arith.addf %83, %85 : vector<1x64xf32>
    %87 = math.rsqrt %86 : vector<1x64xf32>
    %88 = arith.mulf %84, %87 : vector<1x64xf32>
    %89 = vector.broadcast %88 : vector<1x64xf32> to vector<32x64xf32>
    %90 = arith.mulf %76, %89 : vector<32x64xf32>
    %c0_84 = arith.constant 0 : index
    %c0_85 = arith.constant 0 : index
    %91 = vector.load %arg8[%c0_84, %c0_85] : memref<1x64xf32, #tpu.memory_space<vmem>>, vector<1x64xf32>
    %92 = vector.broadcast %91 : vector<1x64xf32> to vector<32x64xf32>
    %93 = arith.addf %90, %92 : vector<32x64xf32>
    %c0_86 = arith.constant 0 : index
    %c0_87 = arith.constant 0 : index
    %c0_88 = arith.constant 0 : index
    %94 = vector.load %arg0[%c0_86, %c0_87, %c0_88] : memref<2x16x64xf32, #tpu.memory_space<vmem>>, vector<2x16x64xf32>
    %95 = vector.shape_cast %94 : vector<2x16x64xf32> to vector<32x64xf32>
    %96 = arith.addf %93, %95 : vector<32x64xf32>
    %cst_89 = arith.constant 0.000000e+00 : f32
    %97 = vector.broadcast %cst_89 : f32 to vector<32x64xf32>
    %98 = arith.maximumf %96, %97 : vector<32x64xf32>
    %c0_90 = arith.constant 0 : index
    %c0_91 = arith.constant 0 : index
    %99 = vector.load %arg9[%c0_90, %c0_91] : memref<32x64xf32, #tpu.memory_space<vmem>>, vector<32x64xf32>
    tpu.vector_store %arg9[%c0_90, %c0_91], %98 {strides = array<i32>} : memref<32x64xf32, #tpu.memory_space<vmem>>, vector<32x64xf32>,
    return
  }
}

</mosaic_0001>

<llo_original>
// kernel: tile.18
$region0: #{tile.18}
  #allocation0 [shape = 's32[1]{0}', space=sflag, size = 0x4, scoped, tag = 'scoped memory for tile.18']
  %s0 = inlined_call_operand.vmem [shape: f32[8], index: 0, kind: input, shape index: {}]
  %s1 = inlined_call_operand.vmem [shape: f32[16,8], index: 1, kind: output, shape index: {}]
  // Predicated region
  $region2: #{tile.18} parent=0 // pred_check
    _
  $region3: #{tile.18} parent=0 // pred_check_branch
    %3 = sbr.rel (0) target = $region5
  $region4: #{tile.18} parent=0 // pred_region
    _
  $region5: #{tile.18} parent=0 // pred_fallthru
    _
  %v4 = vld [vmem:[%s0] ss:$0 sm:$0xff]
  %5 = vst [vmem:[%s1] sm:$0xff] %v4
  %s6 = scalar_lea.vmem %s1, 8
  %7 = vst [vmem:[%s6] sm:$0xff] %v4

// kernel: tile.19
$region0: #{tile.19}
  %s0 = inlined_call_operand.vmem [shape: f32[16,8], index: 0, kind: input, shape index: {}]
  %s1 = inlined_call_operand.vmem [shape: f32[1,128], index: 1, kind: output, shape index: {}]
  $region1: #{tile.19} parent=0
    #allocation0 [shape = 'u8[4096]{0}', space=vmem, size = 0x1000, scoped, tag = 'scoped mem for output reshape']
    %v2 = vld [vmem:[%s0] sm:$0x1]
    %vm3 = vcmask 64512
    %4 = vst.msk [vmem:[#allocation0] sm:$0x1] %vm3, %v2
    %s5 = scalar_lea.vmem %s0, 15
    %v6 = vld [vmem:[%s5] sm:$0x1]
    %7 = vrot.lane.b32.xlu0 %v6, 120
    %v8 = vpop.permute.xlu0 %7
    %vm9 = vcmask 1048512
    %10 = vst.msk [vmem:[#allocation0] sm:$0x1] %vm9, %v8
    %s11 = scalar_lea.vmem %s0, 14
    %v12 = vld [vmem:[%s11] sm:$0x1]
    %13 = vrot.lane.b32.xlu0 %v12, 112
    %v14 = vpop.permute.xlu0 %13
    %vm15 = vcmask 982912
    %16 = vst.msk [vmem:[#allocation0] sm:$0x1] %vm15, %v14
    %s17 = scalar_lea.vmem %s0, 13
    %v18 = vld [vmem:[%s17] sm:$0x1]
    %19 = vrot.lane.b32.xlu0 %v18, 104
    %v20 = vpop.permute.xlu0 %19
    %vm21 = vcmask 917312
    %22 = vst.msk [vmem:[#allocation0] sm:$0x1] %vm21, %v20
    %s23 = scalar_lea.vmem %s0, 12
    %v24 = vld [vmem:[%s23] sm:$0x1]
    %25 = vrot.lane.b32.xlu0 %v24, 96
    %v26 = vpop.permute.xlu0 %25
    %vm27 = vcmask 851712
    %28 = vst.msk [vmem:[#allocation0] sm:$0x1] %vm27, %v26
    %s29 = scalar_lea.vmem %s0, 11
    %v30 = vld [vmem:[%s29] sm:$0x1]
    %31 = vrot.lane.b32.xlu0 %v30, 88
    %v32 = vpop.permute.xlu0 %31
    %vm33 = vcmask 786112
    %34 = vst.msk [vmem:[#allocation0] sm:$0x1] %vm33, %v32
    %s35 = scalar_lea.vmem %s0, 10
    %v36 = vld [vmem:[%s35] sm:$0x1]
    %37 = vrot.lane.b32.xlu0 %v36, 80
    %v38 = vpop.permute.xlu0 %37
    %vm39 = vcmask 720512
    %40 = vst.msk [vmem:[#allocation0] sm:$0x1] %vm39, %v38
    %s41 = scalar_lea.vmem %s0, 9
    %v42 = vld [vmem:[%s41] sm:$0x1]
    %43 = vrot.lane.b32.xlu0 %v42, 72
    %v44 = vpop.permute.xlu0 %43
    %vm45 = vcmask 654912
    %46 = vst.msk [vmem:[#allocation0] sm:$0x1] %vm45, %v44
    %s47 = scalar_lea.vmem %s0, 8
    %v48 = vld [vmem:[%s47] sm:$0x1]
    %49 = vrot.lane.b32.xlu0 %v48, 64
    %v50 = vpop.permute.xlu0 %49
    %vm51 = vcmask 589312
    %52 = vst.msk [vmem:[#allocation0] sm:$0x1] %vm51, %v50
    %s53 = scalar_lea.vmem %s0, 7
    %v54 = vld [vmem:[%s53] sm:$0x1]
    %55 = vrot.lane.b32.xlu0 %v54, 56
    %v56 = vpop.permute.xlu0 %55
    %vm57 = vcmask 523712
    %58 = vst.msk [vmem:[#allocation0] sm:$0x1] %vm57, %v56
    %s59 = scalar_lea.vmem %s0, 6
    %v60 = vld [vmem:[%s59] sm:$0x1]
    %61 = vrot.lane.b32.xlu0 %v60, 48
    %v62 = vpop.permute.xlu0 %61
    %vm63 = vcmask 458112
    %64 = vst.msk [vmem:[#allocation0] sm:$0x1] %vm63, %v62
    %s65 = scalar_lea.vmem %s0, 5
    %v66 = vld [vmem:[%s65] sm:$0x1]
    %67 = vrot.lane.b32.xlu0 %v66, 40
    %v68 = vpop.permute.xlu0 %67
    %vm69 = vcmask 392512
    %70 = vst.msk [vmem:[#allocation0] sm:$0x1] %vm69, %v68
    %s71 = scalar_lea.vmem %s0, 4
    %v72 = vld [vmem:[%s71] sm:$0x1]
    %73 = vrot.lane.b32.xlu0 %v72, 32
    %v74 = vpop.permute.xlu0 %73
    %vm75 = vcmask 326912
    %76 = vst.msk [vmem:[#allocation0] sm:$0x1] %vm75, %v74
    %s77 = scalar_lea.vmem %s0, 3
    %v78 = vld [vmem:[%s77] sm:$0x1]
    %79 = vrot.lane.b32.xlu0 %v78, 24
    %v80 = vpop.permute.xlu0 %79
    %vm81 = vcmask 261312
    %82 = vst.msk [vmem:[#allocation0] sm:$0x1] %vm81, %v80
    %s83 = scalar_lea.vmem %s0, 2
    %v84 = vld [vmem:[%s83] sm:$0x1]
    %85 = vrot.lane.b32.xlu0 %v84, 16
    %v86 = vpop.permute.xlu0 %85
    %vm87 = vcmask 195712
    %88 = vst.msk [vmem:[#allocation0] sm:$0x1] %vm87, %v86
    %s89 = scalar_lea.vmem %s0, 1
    %v90 = vld [vmem:[%s89] sm:$0x1]
    %91 = vrot.lane.b32.xlu0 %v90, 8
    %v92 = vpop.permute.xlu0 %91
    %vm93 = vcmask 130112
    %94 = vst.msk [vmem:[#allocation0] sm:$0x1] %vm93, %v92
    %s96 = sshllo.u32 0, 1
    %v98 = vld [vmem:[#allocation0] sm:%s96]
    %s99 = sshllo.u32 0, 1
    %100 = vst [vmem:[%s1] sm:%s99] %v98

// kernel: tile.26
$region0: #{tile.26}
  #allocation0 [shape = 's32[1]{0}', space=sflag, size = 0x4, scoped, tag = 'scoped memory for tile.26']
  %s0 = inlined_call_operand.vmem [shape: f32[4], index: 0, kind: input, shape index: {}]
  %s1 = inlined_call_operand.vmem [shape: f32[16,4], index: 1, kind: output, shape index: {}]
  // Predicated region
  $region2: #{tile.26} parent=0 // pred_check
    _
  $region3: #{tile.26} parent=0 // pred_check_branch
    %3 = sbr.rel (0) target = $region5
  $region4: #{tile.26} parent=0 // pred_region
    _
  $region5: #{tile.26} parent=0 // pred_fallthru
    _
  %v4 = vld [vmem:[%s0] ss:$0 sm:$0xff]
  %5 = vst [vmem:[%s1] sm:$0xff] %v4
  %s6 = scalar_lea.vmem %s1, 8
  %7 = vst [vmem:[%s6] sm:$0xff] %v4

// kernel: tile.27
$region0: #{tile.27}
  %s0 = inlined_call_operand.vmem [shape: f32[16,4], index: 0, kind: input, shape index: {}]
  %s1 = inlined_call_operand.vmem [shape: f32[1,64], index: 1, kind: output, shape index: {}]
  $region1: #{tile.27} parent=0
    #allocation0 [shape = 'u8[4096]{0}', space=vmem, size = 0x1000, scoped, tag = 'scoped mem for output reshape']
    %v2 = vld [vmem:[%s0] sm:$0x1]
    %vm3 = vcmask 31744
    %4 = vst.msk [vmem:[#allocation0] sm:$0x1] %vm3, %v2
    %s5 = scalar_lea.vmem %s0, 15
    %v6 = vld [vmem:[%s5] sm:$0x1]
    %7 = vrot.lane.b32.xlu0 %v6, 60
    %v8 = vpop.permute.xlu0 %7
    %vm9 = vcmask 523744
    %10 = vst.msk [vmem:[#allocation0] sm:$0x1] %vm9, %v8
    %s11 = scalar_lea.vmem %s0, 14
    %v12 = vld [vmem:[%s11] sm:$0x1]
    %13 = vrot.lane.b32.xlu0 %v12, 56
    %v14 = vpop.permute.xlu0 %13
    %vm15 = vcmask 490944
    %16 = vst.msk [vmem:[#allocation0] sm:$0x1] %vm15, %v14
    %s17 = scalar_lea.vmem %s0, 13
    %v18 = vld [vmem:[%s17] sm:$0x1]
    %19 = vrot.lane.b32.xlu0 %v18, 52
    %v20 = vpop.permute.xlu0 %19
    %vm21 = vcmask 458144
    %22 = vst.msk [vmem:[#allocation0] sm:$0x1] %vm21, %v20
    %s23 = scalar_lea.vmem %s0, 12
    %v24 = vld [vmem:[%s23] sm:$0x1]
    %25 = vrot.lane.b32.xlu0 %v24, 48
    %v26 = vpop.permute.xlu0 %25
    %vm27 = vcmask 425344
    %28 = vst.msk [vmem:[#allocation0] sm:$0x1] %vm27, %v26
    %s29 = scalar_lea.vmem %s0, 11
    %v30 = vld [vmem:[%s29] sm:$0x1]
    %31 = vrot.lane.b32.xlu0 %v30, 44
    %v32 = vpop.permute.xlu0 %31
    %vm33 = vcmask 392544
    %34 = vst.msk [vmem:[#allocation0] sm:$0x1] %vm33, %v32
    %s35 = scalar_lea.vmem %s0, 10
    %v36 = vld [vmem:[%s35] sm:$0x1]
    %37 = vrot.lane.b32.xlu0 %v36, 40
    %v38 = vpop.permute.xlu0 %37
    %vm39 = vcmask 359744
    %40 = vst.msk [vmem:[#allocation0] sm:$0x1] %vm39, %v38
    %s41 = scalar_lea.vmem %s0, 9
    %v42 = vld [vmem:[%s41] sm:$0x1]
    %43 = vrot.lane.b32.xlu0 %v42, 36
    %v44 = vpop.permute.xlu0 %43
    %vm45 = vcmask 326944
    %46 = vst.msk [vmem:[#allocation0] sm:$0x1] %vm45, %v44
    %s47 = scalar_lea.vmem %s0, 8
    %v48 = vld [vmem:[%s47] sm:$0x1]
    %49 = vrot.lane.b32.xlu0 %v48, 32
    %v50 = vpop.permute.xlu0 %49
    %vm51 = vcmask 294144
    %52 = vst.msk [vmem:[#allocation0] sm:$0x1] %vm51, %v50
    %s53 = scalar_lea.vmem %s0, 7
    %v54 = vld [vmem:[%s53] sm:$0x1]
    %55 = vrot.lane.b32.xlu0 %v54, 28
    %v56 = vpop.permute.xlu0 %55
    %vm57 = vcmask 261344
    %58 = vst.msk [vmem:[#allocation0] sm:$0x1] %vm57, %v56
    %s59 = scalar_lea.vmem %s0, 6
    %v60 = vld [vmem:[%s59] sm:$0x1]
    %61 = vrot.lane.b32.xlu0 %v60, 24
    %v62 = vpop.permute.xlu0 %61
    %vm63 = vcmask 228544
    %64 = vst.msk [vmem:[#allocation0] sm:$0x1] %vm63, %v62
    %s65 = scalar_lea.vmem %s0, 5
    %v66 = vld [vmem:[%s65] sm:$0x1]
    %67 = vrot.lane.b32.xlu0 %v66, 20
    %v68 = vpop.permute.xlu0 %67
    %vm69 = vcmask 195744
    %70 = vst.msk [vmem:[#allocation0] sm:$0x1] %vm69, %v68
    %s71 = scalar_lea.vmem %s0, 4
    %v72 = vld [vmem:[%s71] sm:$0x1]
    %73 = vrot.lane.b32.xlu0 %v72, 16
    %v74 = vpop.permute.xlu0 %73
    %vm75 = vcmask 162944
    %76 = vst.msk [vmem:[#allocation0] sm:$0x1] %vm75, %v74
    %s77 = scalar_lea.vmem %s0, 3
    %v78 = vld [vmem:[%s77] sm:$0x1]
    %79 = vrot.lane.b32.xlu0 %v78, 12
    %v80 = vpop.permute.xlu0 %79
    %vm81 = vcmask 130144
    %82 = vst.msk [vmem:[#allocation0] sm:$0x1] %vm81, %v80
    %s83 = scalar_lea.vmem %s0, 2
    %v84 = vld [vmem:[%s83] sm:$0x1]
    %85 = vrot.lane.b32.xlu0 %v84, 8
    %v86 = vpop.permute.xlu0 %85
    %vm87 = vcmask 97344
    %88 = vst.msk [vmem:[#allocation0] sm:$0x1] %vm87, %v86
    %s89 = scalar_lea.vmem %s0, 1
    %v90 = vld [vmem:[%s89] sm:$0x1]
    %91 = vrot.lane.b32.xlu0 %v90, 4
    %v92 = vpop.permute.xlu0 %91
    %vm93 = vcmask 64544
    %94 = vst.msk [vmem:[#allocation0] sm:$0x1] %vm93, %v92
    %s96 = sshllo.u32 0, 1
    %v98 = vld [vmem:[#allocation0] sm:%s96]
    %s99 = sshllo.u32 0, 1
    %100 = vst [vmem:[%s1] sm:%s99] %v98

// kernel: residual_block.1
$region0: #{residual_block.1}
  #allocation0 [shape = 'u32[]', space=smem, size = 0x4, offset = 0x4, fixed_abs, tag = 'smem constant byte address 0x4 - core index']
  #allocation1 [shape = 'u32[144,128]{1,0:T(1,128)}', space=vmem, size = 0x12000, scoped, tag = 'internal scratch']
  #allocation2 [shape = 'f32[2,18,64]{2,1,0:T(8,128)}', space=vmem, size = 0x6000, scoped, tag = 'scratch operand']
  #allocation3 [shape = 'f32[2,18,128]{2,1,0:T(8,128)}', space=vmem, size = 0x6000, scoped, tag = 'scratch operand']
  %s0 = inlined_call_operand.vmem [shape: f32[2,16,64], index: 0, kind: input, shape index: {}]
  %s1 = inlined_call_operand.vmem [shape: f32[3,64,128], index: 1, kind: input, shape index: {}]
  %s2 = inlined_call_operand.vmem [shape: f32[3,128,64], index: 2, kind: input, shape index: {}]
  %s3 = inlined_call_operand.vmem [shape: f32[128,128], index: 3, kind: input, shape index: {}]
  %s4 = inlined_call_operand.vmem [shape: f32[64,64], index: 4, kind: input, shape index: {}]
  %s5 = inlined_call_operand.vmem [shape: f32[1,128], index: 5, kind: input, shape index: {}]
  %s6 = inlined_call_operand.vmem [shape: f32[1,128], index: 6, kind: input, shape index: {}]
  %s7 = inlined_call_operand.vmem [shape: f32[1,64], index: 7, kind: input, shape index: {}]
  %s8 = inlined_call_operand.vmem [shape: f32[1,64], index: 8, kind: input, shape index: {}]
  %s9 = inlined_call_operand.vmem [shape: f32[32,64], index: 9, kind: output, shape index: {}]
  %s10 = sld [smem:[#allocation0]]
  $region46: #{residual_block.1} parent=0
    _
  %s12 = ssub.s32 1, %s10
  %s13 = scalar_select 0, %s12, %s10
  // Predicated region
  $region2: #{residual_block.1} parent=0 // pred_check
    _
  $region3: #{residual_block.1} parent=0 // pred_check_branch
    %15 = sbr.rel (0) target = $region5
  $region4: #{residual_block.1} parent=0 // pred_region
    _
  $region5: #{residual_block.1} parent=0 // pred_fallthru
    _
  // Predicated region
  $region6: #{residual_block.1} parent=0 // pred_check
    _
  $region7: #{residual_block.1} parent=0 // pred_check_branch
    %17 = sbr.rel (0) target = $region9
  $region8: #{residual_block.1} parent=0 // pred_region
    _
  $region9: #{residual_block.1} parent=0 // pred_fallthru
    _
  // Predicated region
  $region10: #{residual_block.1} parent=0 // pred_check
    _
  $region11: #{residual_block.1} parent=0 // pred_check_branch
    %19 = sbr.rel (0) target = $region13
  $region12: #{residual_block.1} parent=0 // pred_region
    _
  $region13: #{residual_block.1} parent=0 // pred_fallthru
    _
  // Predicated region
  $region14: #{residual_block.1} parent=0 // pred_check
    _
  $region15: #{residual_block.1} parent=0 // pred_check_branch
    %21 = sbr.rel (0) target = $region17
  $region16: #{residual_block.1} parent=0 // pred_region
    _
  $region17: #{residual_block.1} parent=0 // pred_fallthru
    _
  // Predicated region
  $region18: #{residual_block.1} parent=0 // pred_check
    _
  $region19: #{residual_block.1} parent=0 // pred_check_branch
    %23 = sbr.rel (0) target = $region21
  $region20: #{residual_block.1} parent=0 // pred_region
    _
  $region21: #{residual_block.1} parent=0 // pred_fallthru
    _
  // Predicated region
  $region22: #{residual_block.1} parent=0 // pred_check
    _
  $region23: #{residual_block.1} parent=0 // pred_check_branch
    %25 = sbr.rel (0) target = $region25
  $region24: #{residual_block.1} parent=0 // pred_region
    _
  $region25: #{residual_block.1} parent=0 // pred_fallthru
    _
  // Predicated region
  $region26: #{residual_block.1} parent=0 // pred_check
    _
  $region27: #{residual_block.1} parent=0 // pred_check_branch
    %27 = sbr.rel (0) target = $region29
  $region28: #{residual_block.1} parent=0 // pred_region
    _
  $region29: #{residual_block.1} parent=0 // pred_fallthru
    _
  // Predicated region
  $region30: #{residual_block.1} parent=0 // pred_check
    _
  $region31: #{residual_block.1} parent=0 // pred_check_branch
    %29 = sbr.rel (0) target = $region33
  $region32: #{residual_block.1} parent=0 // pred_region
    _
  $region33: #{residual_block.1} parent=0 // pred_fallthru
    _
  // Predicated region
  $region34: #{residual_block.1} parent=0 // pred_check
    _
  $region35: #{residual_block.1} parent=0 // pred_check_branch
    %31 = sbr.rel (0) target = $region37
  $region36: #{residual_block.1} parent=0 // pred_region
    _
  $region37: #{residual_block.1} parent=0 // pred_fallthru
    _
  %vm32 = vcmask 523264
  %33 = vst.msk [vmem:[#allocation2] sm:$0xff] %vm32, 0.0
  %34 = vst.msk [vmem:[#allocation2 + $0x8] sm:$0xff] %vm32, 0.0
  %vm35 = vcmask 517120
  %36 = vst.msk [vmem:[#allocation2 + $0x10] sm:$0x3] %vm35, 0.0
  %37 = vst.msk [vmem:[#allocation2 + $0x18] sm:$0xff] %vm32, 0.0
  %38 = vst.msk [vmem:[#allocation2 + $0x20] sm:$0xff] %vm32, 0.0
  %39 = vst.msk [vmem:[#allocation2 + $0x28] sm:$0x3] %vm35, 0.0
  %v40 = vld [vmem:[%s0] sm:$0xff]
  %v41 = vld [vmem:[%s0 + $0x8] sm:$0xff]
  %v42 = vld [vmem:[%s0 + $0x10] sm:$0xff]
  %v43 = vld [vmem:[%s0 + $0x18] sm:$0xff]
  %44 = vst.msk [vmem:[#allocation2 + $0x1] sm:$0xff] %vm32, %v40
  %45 = vst.msk [vmem:[#allocation2 + $0x9] sm:$0xff] %vm32, %v41
  %46 = vst.msk [vmem:[#allocation2 + $0x19] sm:$0xff] %vm32, %v42
  %47 = vst.msk [vmem:[#allocation2 + $0x21] sm:$0xff] %vm32, %v43
  %v48 = vld [vmem:[#allocation2] sm:$0xff]
  %v49 = vld [vmem:[#allocation2 + $0x8] sm:$0xff]
  %v50 = vld [vmem:[#allocation2 + $0x18] sm:$0xff]
  %v51 = vld [vmem:[#allocation2 + $0x20] sm:$0xff]
  %v52 = vld [vmem:[%s1] sm:$0xff]
  %v53 = vld [vmem:[%s1 + $0x8] sm:$0xff]
  %v54 = vld [vmem:[%s1 + $0x10] sm:$0xff]
  %v55 = vld [vmem:[%s1 + $0x18] sm:$0xff]
  %v56 = vld [vmem:[%s1 + $0x20] sm:$0xff]
  %v57 = vld [vmem:[%s1 + $0x28] sm:$0xff]
  %v58 = vld [vmem:[%s1 + $0x30] sm:$0xff]
  %v59 = vld [vmem:[%s1 + $0x38] sm:$0xff]
  %v60 = vld [vmem:[#allocation2 + $0x1] sm:$0xff]
  %v61 = vld [vmem:[#allocation2 + $0x9] sm:$0xff]
  %v62 = vld [vmem:[#allocation2 + $0x19] sm:$0xff]
  %v63 = vld [vmem:[#allocation2 + $0x21] sm:$0xff]
  %s64 = scalar_lea.vmem %s1, 64
  %v65 = vld [vmem:[%s64] sm:$0xff]
  %v66 = vld [vmem:[%s64 + $0x8] sm:$0xff]
  %v67 = vld [vmem:[%s64 + $0x10] sm:$0xff]
  %v68 = vld [vmem:[%s64 + $0x18] sm:$0xff]
  %v69 = vld [vmem:[%s64 + $0x20] sm:$0xff]
  %v70 = vld [vmem:[%s64 + $0x28] sm:$0xff]
  %v71 = vld [vmem:[%s64 + $0x30] sm:$0xff]
  %v72 = vld [vmem:[%s64 + $0x38] sm:$0xff]
  %v74 = vsel %vm32, %v60, 0
  %v77 = vsel %vm32, %v61, 0
  %v80 = vsel %vm32, %v62, 0
  %v83 = vsel %vm32, %v63, 0
  %85 = vmatprep.subr.mxu0 0.0
  %86 = vmatpush1.msra.mxu0 %v65
  %87 = vmatprep.subr.mxu0 0.0
  %88 = vmatpush1.msra.mxu0 %v66
  %89 = vmatprep.subr.mxu0 0.0
  %90 = vmatpush1.msra.mxu0 %v67
  %91 = vmatprep.subr.mxu0 0.0
  %92 = vmatpush1.msra.mxu0 %v68
  %93 = vmatprep.subr.mxu0 0.0
  %94 = vmatpush1.msra.mxu0 %v69
  %95 = vmatprep.subr.mxu0 0.0
  %96 = vmatpush1.msra.mxu0 %v70
  %97 = vmatprep.subr.mxu0 0.0
  %98 = vmatpush1.msra.mxu0 %v71
  %99 = vmatprep.subr.mxu0 0.0
  %100 = vmatpush1.msra.mxu0 %v72
  %101 = vmatprep.subr.mxu0 0.0
  %102 = vmatpush1.msra.mxu0 0.0
  %103 = vmatprep.subr.mxu0 0.0
  %104 = vmatpush1.msra.mxu0 0.0
  %105 = vmatprep.subr.mxu0 0.0
  %106 = vmatpush1.msra.mxu0 0.0
  %107 = vmatprep.subr.mxu0 0.0
  %108 = vmatpush1.msra.mxu0 0.0
  %109 = vmatprep.subr.mxu0 0.0
  %110 = vmatpush1.msra.mxu0 0.0
  %111 = vmatprep.subr.mxu0 0.0
  %112 = vmatpush1.msra.mxu0 0.0
  %113 = vmatprep.subr.mxu0 0.0
  %114 = vmatpush1.msra.mxu0 0.0
  %115 = vmatprep.subr.mxu0 0.0
  %116 = vmatpush1.msra.mxu0 0.0
  %117 = vmatprep.subr.mxu0 0.0
  %118 = vmatpush1.msra.mxu0 0.0
  %119 = vmatprep.subr.mxu0 0.0
  %120 = vmatpush1.msra.mxu0 0.0
  %121 = vmatprep.subr.mxu0 0.0
  %122 = vmatpush1.msra.mxu0 0.0
  %123 = vmatprep.subr.mxu0 0.0
  %124 = vmatpush1.msra.mxu0 0.0
  %125 = vmatprep.subr.mxu0 0.0
  %126 = vmatpush1.msra.mxu0 0.0
  %127 = vmatprep.subr.mxu0 0.0
  %128 = vmatpush1.msra.mxu0 0.0
  %129 = vmatprep.subr.mxu0 0.0
  %130 = vmatpush1.msra.mxu0 0.0
  %131 = vmatprep.subr.mxu0 0.0
  %132 = vmatpush1.msra.mxu0 0.0
  %133 = vmatprep.subr.mxu0 0.0
  %134 = vmatpush1.msra.mxu0 0.0
  %135 = vmatprep.subr.mxu0 0.0
  %136 = vmatpush1.msra.mxu0 0.0
  %137 = vmatprep.subr.mxu0 0.0
  %138 = vmatpush1.msra.mxu0 0.0
  %139 = vmatprep.subr.mxu0 0.0
  %140 = vmatpush1.msra.mxu0 0.0
  %141 = vmatprep.subr.mxu0 0.0
  %142 = vmatpush1.msra.mxu0 0.0
  %143 = vmatprep.subr.mxu0 0.0
  %144 = vmatpush1.msra.mxu0 0.0
  %145 = vmatprep.subr.mxu0 0.0
  %146 = vmatpush1.msra.mxu0 0.0
  %147 = vmatprep.subr.mxu0 0.0
  %148 = vmatpush1.msra.mxu0 0.0
  %149 = vmatprep.mubr.f32.mxu0 0.0
  %150 = vmatmul.mubr.f32.gmra.mrb[0].mxu0 %v74
  %v151 = vpop.f32.mrb[0].mxu0
  %v152 = vadd.f32 0.0, %v151
  %v153 = vpop.f32.mrb[0].mxu0
  %154 = vmatprep.mubr.f32.mxu0 0.0
  %155 = vmatmul.mubr.f32.gmra.mrb[0].mxu0 %v77
  %v156 = vpop.f32.mrb[0].mxu0
  %v157 = vadd.f32 0.0, %v156
  %v158 = vpop.f32.mrb[0].mxu0
  %159 = vmatprep.mubr.f32.mxu0 0.0
  %160 = vmatmul.mubr.f32.gmra.mrb[0].mxu0 %v80
  %v161 = vpop.f32.mrb[0].mxu0
  %v162 = vadd.f32 0.0, %v161
  %v163 = vpop.f32.mrb[0].mxu0
  %164 = vmatprep.mubr.f32.mxu0 0.0
  %165 = vmatmul.mubr.f32.gmra.mrb[0].mxu0 %v83
  %v166 = vpop.f32.mrb[0].mxu0
  %v167 = vadd.f32 0.0, %v166
  %v168 = vpop.f32.mrb[0].mxu0
  %169 = vdwg.mxu0
  %v171 = vsel %vm32, %v48, 0
  %v174 = vsel %vm32, %v49, 0
  %v177 = vsel %vm32, %v50, 0
  %v180 = vsel %vm32, %v51, 0
  %182 = vmatprep.subr.mxu0 0.0
  %183 = vmatpush1.msra.mxu0 %v52
  %184 = vmatprep.subr.mxu0 0.0
  %185 = vmatpush1.msra.mxu0 %v53
  %186 = vmatprep.subr.mxu0 0.0
  %187 = vmatpush1.msra.mxu0 %v54
  %188 = vmatprep.subr.mxu0 0.0
  %189 = vmatpush1.msra.mxu0 %v55
  %190 = vmatprep.subr.mxu0 0.0
  %191 = vmatpush1.msra.mxu0 %v56
  %192 = vmatprep.subr.mxu0 0.0
  %193 = vmatpush1.msra.mxu0 %v57
  %194 = vmatprep.subr.mxu0 0.0
  %195 = vmatpush1.msra.mxu0 %v58
  %196 = vmatprep.subr.mxu0 0.0
  %197 = vmatpush1.msra.mxu0 %v59
  %198 = vmatprep.subr.mxu0 0.0
  %199 = vmatpush1.msra.mxu0 0.0
  %200 = vmatprep.subr.mxu0 0.0
  %201 = vmatpush1.msra.mxu0 0.0
  %202 = vmatprep.subr.mxu0 0.0
  %203 = vmatpush1.msra.mxu0 0.0
  %204 = vmatprep.subr.mxu0 0.0
  %205 = vmatpush1.msra.mxu0 0.0
  %206 = vmatprep.subr.mxu0 0.0
  %207 = vmatpush1.msra.mxu0 0.0
  %208 = vmatprep.subr.mxu0 0.0
  %209 = vmatpush1.msra.mxu0 0.0
  %210 = vmatprep.subr.mxu0 0.0
  %211 = vmatpush1.msra.mxu0 0.0
  %212 = vmatprep.subr.mxu0 0.0
  %213 = vmatpush1.msra.mxu0 0.0
  %214 = vmatprep.subr.mxu0 0.0
  %215 = vmatpush1.msra.mxu0 0.0
  %216 = vmatprep.subr.mxu0 0.0
  %217 = vmatpush1.msra.mxu0 0.0
  %218 = vmatprep.subr.mxu0 0.0
  %219 = vmatpush1.msra.mxu0 0.0
  %220 = vmatprep.subr.mxu0 0.0
  %221 = vmatpush1.msra.mxu0 0.0
  %222 = vmatprep.subr.mxu0 0.0
  %223 = vmatpush1.msra.mxu0 0.0
  %224 = vmatprep.subr.mxu0 0.0
  %225 = vmatpush1.msra.mxu0 0.0
  %226 = vmatprep.subr.mxu0 0.0
  %227 = vmatpush1.msra.mxu0 0.0
  %228 = vmatprep.subr.mxu0 0.0
  %229 = vmatpush1.msra.mxu0 0.0
  %230 = vmatprep.subr.mxu0 0.0
  %231 = vmatpush1.msra.mxu0 0.0
  %232 = vmatprep.subr.mxu0 0.0
  %233 = vmatpush1.msra.mxu0 0.0
  %234 = vmatprep.subr.mxu0 0.0
  %235 = vmatpush1.msra.mxu0 0.0
  %236 = vmatprep.subr.mxu0 0.0
  %237 = vmatpush1.msra.mxu0 0.0
  %238 = vmatprep.subr.mxu0 0.0
  %239 = vmatpush1.msra.mxu0 0.0
  %240 = vmatprep.subr.mxu0 0.0
  %241 = vmatpush1.msra.mxu0 0.0
  %242 = vmatprep.subr.mxu0 0.0
  %243 = vmatpush1.msra.mxu0 0.0
  %244 = vmatprep.subr.mxu0 0.0
  %245 = vmatpush1.msra.mxu0 0.0
  %246 = vmatprep.mubr.f32.mxu0 0.0
  %247 = vmatmul.mubr.f32.gmra.mrb[0].mxu0 %v171
  %v248 = vpop.f32.mrb[0].mxu0
  %v249 = vadd.f32 %v152, %v248
  %v250 = vpop.f32.mrb[0].mxu0
  %251 = vmatprep.mubr.f32.mxu0 0.0
  %252 = vmatmul.mubr.f32.gmra.mrb[0].mxu0 %v174
  %v253 = vpop.f32.mrb[0].mxu0
  %v254 = vadd.f32 %v157, %v253
  %v255 = vpop.f32.mrb[0].mxu0
  %256 = vmatprep.mubr.f32.mxu0 0.0
  %257 = vmatmul.mubr.f32.gmra.mrb[0].mxu0 %v177
  %v258 = vpop.f32.mrb[0].mxu0
  %v259 = vadd.f32 %v162, %v258
  %v260 = vpop.f32.mrb[0].mxu0
  %261 = vmatprep.mubr.f32.mxu0 0.0
  %262 = vmatmul.mubr.f32.gmra.mrb[0].mxu0 %v180
  %v263 = vpop.f32.mrb[0].mxu0
  %v264 = vadd.f32 %v167, %v263
  %v265 = vpop.f32.mrb[0].mxu0
  %266 = vdwg.mxu0
  %v267 = vld [vmem:[#allocation2 + $0x2] sm:$0xff]
  %v268 = vld [vmem:[#allocation2 + $0xa] sm:$0xff]
  %v269 = vld [vmem:[#allocation2 + $0x1a] sm:$0xff]
  %v270 = vld [vmem:[#allocation2 + $0x22] sm:$0xff]
  %s271 = scalar_lea.vmem %s1, 128
  %v272 = vld [vmem:[%s271] sm:$0xff]
  %v273 = vld [vmem:[%s271 + $0x8] sm:$0xff]
  %v274 = vld [vmem:[%s271 + $0x10] sm:$0xff]
  %v275 = vld [vmem:[%s271 + $0x18] sm:$0xff]
  %v276 = vld [vmem:[%s271 + $0x20] sm:$0xff]
  %v277 = vld [vmem:[%s271 + $0x28] sm:$0xff]
  %v278 = vld [vmem:[%s271 + $0x30] sm:$0xff]
  %v279 = vld [vmem:[%s271 + $0x38] sm:$0xff]
  %v281 = vsel %vm32, %v267, 0
  %v284 = vsel %vm32, %v268, 0
  %v287 = vsel %vm32, %v269, 0
  %v290 = vsel %vm32, %v270, 0
  %292 = vmatprep.subr.mxu0 0.0
  %293 = vmatpush1.msra.mxu0 %v272
  %294 = vmatprep.subr.mxu0 0.0
  %295 = vmatpush1.msra.mxu0 %v273
  %296 = vmatprep.subr.mxu0 0.0
  %297 = vmatpush1.msra.mxu0 %v274
  %298 = vmatprep.subr.mxu0 0.0
  %299 = vmatpush1.msra.mxu0 %v275
  %300 = vmatprep.subr.mxu0 0.0
  %301 = vmatpush1.msra.mxu0 %v276
  %302 = vmatprep.subr.mxu0 0.0
  %303 = vmatpush1.msra.mxu0 %v277
  %304 = vmatprep.subr.mxu0 0.0
  %305 = vmatpush1.msra.mxu0 %v278
  %306 = vmatprep.subr.mxu0 0.0
  %307 = vmatpush1.msra.mxu0 %v279
  %308 = vmatprep.subr.mxu0 0.0
  %309 = vmatpush1.msra.mxu0 0.0
  %310 = vmatprep.subr.mxu0 0.0
  %311 = vmatpush1.msra.mxu0 0.0
  %312 = vmatprep.subr.mxu0 0.0
  %313 = vmatpush1.msra.mxu0 0.0
  %314 = vmatprep.subr.mxu0 0.0
  %315 = vmatpush1.msra.mxu0 0.0
  %316 = vmatprep.subr.mxu0 0.0
  %317 = vmatpush1.msra.mxu0 0.0
  %318 = vmatprep.subr.mxu0 0.0
  %319 = vmatpush1.msra.mxu0 0.0
  %320 = vmatprep.subr.mxu0 0.0
  %321 = vmatpush1.msra.mxu0 0.0
  %322 = vmatprep.subr.mxu0 0.0
  %323 = vmatpush1.msra.mxu0 0.0
  %324 = vmatprep.subr.mxu0 0.0
  %325 = vmatpush1.msra.mxu0 0.0
  %326 = vmatprep.subr.mxu0 0.0
  %327 = vmatpush1.msra.mxu0 0.0
  %328 = vmatprep.subr.mxu0 0.0
  %329 = vmatpush1.msra.mxu0 0.0
  %330 = vmatprep.subr.mxu0 0.0
  %331 = vmatpush1.msra.mxu0 0.0
  %332 = vmatprep.subr.mxu0 0.0
  %333 = vmatpush1.msra.mxu0 0.0
  %334 = vmatprep.subr.mxu0 0.0
  %335 = vmatpush1.msra.mxu0 0.0
  %336 = vmatprep.subr.mxu0 0.0
  %337 = vmatpush1.msra.mxu0 0.0
  %338 = vmatprep.subr.mxu0 0.0
  %339 = vmatpush1.msra.mxu0 0.0
  %340 = vmatprep.subr.mxu0 0.0
  %341 = vmatpush1.msra.mxu0 0.0
  %342 = vmatprep.subr.mxu0 0.0
  %343 = vmatpush1.msra.mxu0 0.0
  %344 = vmatprep.subr.mxu0 0.0
  %345 = vmatpush1.msra.mxu0 0.0
  %346 = vmatprep.subr.mxu0 0.0
  %347 = vmatpush1.msra.mxu0 0.0
  %348 = vmatprep.subr.mxu0 0.0
  %349 = vmatpush1.msra.mxu0 0.0
  %350 = vmatprep.subr.mxu0 0.0
  %351 = vmatpush1.msra.mxu0 0.0
  %352 = vmatprep.subr.mxu0 0.0
  %353 = vmatpush1.msra.mxu0 0.0
  %354 = vmatprep.subr.mxu0 0.0
  %355 = vmatpush1.msra.mxu0 0.0
  %356 = vmatprep.mubr.f32.mxu0 0.0
  %357 = vmatmul.mubr.f32.gmra.mrb[0].mxu0 %v281
  %v358 = vpop.f32.mrb[0].mxu0
  %v359 = vadd.f32 0.0, %v358
  %v360 = vpop.f32.mrb[0].mxu0
  %361 = vmatprep.mubr.f32.mxu0 0.0
  %362 = vmatmul.mubr.f32.gmra.mrb[0].mxu0 %v284
  %v363 = vpop.f32.mrb[0].mxu0
  %v364 = vadd.f32 0.0, %v363
  %v365 = vpop.f32.mrb[0].mxu0
  %366 = vmatprep.mubr.f32.mxu0 0.0
  %367 = vmatmul.mubr.f32.gmra.mrb[0].mxu0 %v287
  %v368 = vpop.f32.mrb[0].mxu0
  %v369 = vadd.f32 0.0, %v368
  %v370 = vpop.f32.mrb[0].mxu0
  %371 = vmatprep.mubr.f32.mxu0 0.0
  %372 = vmatmul.mubr.f32.gmra.mrb[0].mxu0 %v290
  %v373 = vpop.f32.mrb[0].mxu0
  %v374 = vadd.f32 0.0, %v373
  %v375 = vpop.f32.mrb[0].mxu0
  %376 = vdwg.mxu0
  %v377 = vadd.f32 %v249, %v359
  %v378 = vadd.f32 %v254, %v364
  %v379 = vadd.f32 %v259, %v369
  %v380 = vadd.f32 %v264, %v374
  %v381 = vld [vmem:[%s3] sm:$0xff]
  %v382 = vld [vmem:[%s3 + $0x8] sm:$0xff]
  %v383 = vld [vmem:[%s3 + $0x10] sm:$0xff]
  %v384 = vld [vmem:[%s3 + $0x18] sm:$0xff]
  %v385 = vld [vmem:[%s3 + $0x20] sm:$0xff]
  %v386 = vld [vmem:[%s3 + $0x28] sm:$0xff]
  %v387 = vld [vmem:[%s3 + $0x30] sm:$0xff]
  %v388 = vld [vmem:[%s3 + $0x38] sm:$0xff]
  %v389 = vld [vmem:[%s3 + $0x40] sm:$0xff]
  %v390 = vld [vmem:[%s3 + $0x48] sm:$0xff]
  %v391 = vld [vmem:[%s3 + $0x50] sm:$0xff]
  %v392 = vld [vmem:[%s3 + $0x58] sm:$0xff]
  %v393 = vld [vmem:[%s3 + $0x60] sm:$0xff]
  %v394 = vld [vmem:[%s3 + $0x68] sm:$0xff]
  %v395 = vld [vmem:[%s3 + $0x70] sm:$0xff]
  %v396 = vld [vmem:[%s3 + $0x78] sm:$0xff]
  %397 = vmatprep.subr.mxu0 0.0
  %398 = vmatpush1.msra.mxu0 %v381
  %399 = vmatprep.subr.mxu0 0.0
  %400 = vmatpush1.msra.mxu0 %v382
  %401 = vmatprep.subr.mxu0 0.0
  %402 = vmatpush1.msra.mxu0 %v383
  %403 = vmatprep.subr.mxu0 0.0
  %404 = vmatpush1.msra.mxu0 %v384
  %405 = vmatprep.subr.mxu0 0.0
  %406 = vmatpush1.msra.mxu0 %v385
  %407 = vmatprep.subr.mxu0 0.0
  %408 = vmatpush1.msra.mxu0 %v386
  %409 = vmatprep.subr.mxu0 0.0
  %410 = vmatpush1.msra.mxu0 %v387
  %411 = vmatprep.subr.mxu0 0.0
  %412 = vmatpush1.msra.mxu0 %v388
  %413 = vmatprep.subr.mxu0 0.0
  %414 = vmatpush1.msra.mxu0 %v389
  %415 = vmatprep.subr.mxu0 0.0
  %416 = vmatpush1.msra.mxu0 %v390
  %417 = vmatprep.subr.mxu0 0.0
  %418 = vmatpush1.msra.mxu0 %v391
  %419 = vmatprep.subr.mxu0 0.0
  %420 = vmatpush1.msra.mxu0 %v392
  %421 = vmatprep.subr.mxu0 0.0
  %422 = vmatpush1.msra.mxu0 %v393
  %423 = vmatprep.subr.mxu0 0.0
  %424 = vmatpush1.msra.mxu0 %v394
  %425 = vmatprep.subr.mxu0 0.0
  %426 = vmatpush1.msra.mxu0 %v395
  %427 = vmatprep.subr.mxu0 0.0
  %428 = vmatpush1.msra.mxu0 %v396
  %429 = vmatprep.subr.mxu0 0.0
  %430 = vmatpush1.msra.mxu0 0.0
  %431 = vmatprep.subr.mxu0 0.0
  %432 = vmatpush1.msra.mxu0 0.0
  %433 = vmatprep.subr.mxu0 0.0
  %434 = vmatpush1.msra.mxu0 0.0
  %435 = vmatprep.subr.mxu0 0.0
  %436 = vmatpush1.msra.mxu0 0.0
  %437 = vmatprep.subr.mxu0 0.0
  %438 = vmatpush1.msra.mxu0 0.0
  %439 = vmatprep.subr.mxu0 0.0
  %440 = vmatpush1.msra.mxu0 0.0
  %441 = vmatprep.subr.mxu0 0.0
  %442 = vmatpush1.msra.mxu0 0.0
  %443 = vmatprep.subr.mxu0 0.0
  %444 = vmatpush1.msra.mxu0 0.0
  %445 = vmatprep.subr.mxu0 0.0
  %446 = vmatpush1.msra.mxu0 0.0
  %447 = vmatprep.subr.mxu0 0.0
  %448 = vmatpush1.msra.mxu0 0.0
  %449 = vmatprep.subr.mxu0 0.0
  %450 = vmatpush1.msra.mxu0 0.0
  %451 = vmatprep.subr.mxu0 0.0
  %452 = vmatpush1.msra.mxu0 0.0
  %453 = vmatprep.subr.mxu0 0.0
  %454 = vmatpush1.msra.mxu0 0.0
  %455 = vmatprep.subr.mxu0 0.0
  %456 = vmatpush1.msra.mxu0 0.0
  %457 = vmatprep.subr.mxu0 0.0
  %458 = vmatpush1.msra.mxu0 0.0
  %459 = vmatprep.subr.mxu0 0.0
  %460 = vmatpush1.msra.mxu0 0.0
  %461 = vmatprep.mubr.f32.mxu0 0.0
  %462 = vmatmul.mubr.f32.gmra.mrb[0].mxu0 %v377
  %v463 = vpop.f32.mrb[0].mxu0
  %v464 = vadd.f32 0.0, %v463
  %v465 = vpop.f32.mrb[0].mxu0
  %466 = vmatprep.mubr.f32.mxu0 0.0
  %467 = vmatmul.mubr.f32.gmra.mrb[0].mxu0 %v378
  %v468 = vpop.f32.mrb[0].mxu0
  %v469 = vadd.f32 0.0, %v468
  %v470 = vpop.f32.mrb[0].mxu0
  %471 = vmatprep.mubr.f32.mxu0 0.0
  %472 = vmatmul.mubr.f32.gmra.mrb[0].mxu0 %v379
  %v473 = vpop.f32.mrb[0].mxu0
  %v474 = vadd.f32 0.0, %v473
  %v475 = vpop.f32.mrb[0].mxu0
  %476 = vmatprep.mubr.f32.mxu0 0.0
  %477 = vmatmul.mubr.f32.gmra.mrb[0].mxu0 %v380
  %v478 = vpop.f32.mrb[0].mxu0
  %v479 = vadd.f32 0.0, %v478
  %v480 = vpop.f32.mrb[0].mxu0
  %481 = vdwg.mxu0
  %v482 = vadd.f32 %v464, %v469
  %v483 = vadd.f32 %v482, %v474
  %v484 = vadd.f32 %v483, %v479
  %v485 = vrot.slane %v484, 4
  %v486 = vadd.f32 %v484, %v485
  %v487 = vrot.slane %v486, 2
  %v488 = vadd.f32 %v486, %v487
  %v489 = vrot.slane %v488, 1
  %v490 = vadd.f32 %v488, %v489
  %v491 = vmul.f32 %v490, 0.001953125
  %v492 = vsub.f32 %v377, %v491
  %v493 = vsub.f32 %v378, %v491
  %v494 = vsub.f32 %v379, %v491
  %v495 = vsub.f32 %v380, %v491
  %v496 = vmul.f32 %v492, %v492
  %v497 = vmul.f32 %v493, %v493
  %v498 = vmul.f32 %v494, %v494
  %v499 = vmul.f32 %v495, %v495
  %500 = vmatprep.subr.mxu0 0.0
  %501 = vmatpush1.msra.mxu0 %v381
  %502 = vmatprep.subr.mxu0 0.0
  %503 = vmatpush1.msra.mxu0 %v382
  %504 = vmatprep.subr.mxu0 0.0
  %505 = vmatpush1.msra.mxu0 %v383
  %506 = vmatprep.subr.mxu0 0.0
  %507 = vmatpush1.msra.mxu0 %v384
  %508 = vmatprep.subr.mxu0 0.0
  %509 = vmatpush1.msra.mxu0 %v385
  %510 = vmatprep.subr.mxu0 0.0
  %511 = vmatpush1.msra.mxu0 %v386
  %512 = vmatprep.subr.mxu0 0.0
  %513 = vmatpush1.msra.mxu0 %v387
  %514 = vmatprep.subr.mxu0 0.0
  %515 = vmatpush1.msra.mxu0 %v388
  %516 = vmatprep.subr.mxu0 0.0
  %517 = vmatpush1.msra.mxu0 %v389
  %518 = vmatprep.subr.mxu0 0.0
  %519 = vmatpush1.msra.mxu0 %v390
  %520 = vmatprep.subr.mxu0 0.0
  %521 = vmatpush1.msra.mxu0 %v391
  %522 = vmatprep.subr.mxu0 0.0
  %523 = vmatpush1.msra.mxu0 %v392
  %524 = vmatprep.subr.mxu0 0.0
  %525 = vmatpush1.msra.mxu0 %v393
  %526 = vmatprep.subr.mxu0 0.0
  %527 = vmatpush1.msra.mxu0 %v394
  %528 = vmatprep.subr.mxu0 0.0
  %529 = vmatpush1.msra.mxu0 %v395
  %530 = vmatprep.subr.mxu0 0.0
  %531 = vmatpush1.msra.mxu0 %v396
  %532 = vmatprep.subr.mxu0 0.0
  %533 = vmatpush1.msra.mxu0 0.0
  %534 = vmatprep.subr.mxu0 0.0
  %535 = vmatpush1.msra.mxu0 0.0
  %536 = vmatprep.subr.mxu0 0.0
  %537 = vmatpush1.msra.mxu0 0.0
  %538 = vmatprep.subr.mxu0 0.0
  %539 = vmatpush1.msra.mxu0 0.0
  %540 = vmatprep.subr.mxu0 0.0
  %541 = vmatpush1.msra.mxu0 0.0
  %542 = vmatprep.subr.mxu0 0.0
  %543 = vmatpush1.msra.mxu0 0.0
  %544 = vmatprep.subr.mxu0 0.0
  %545 = vmatpush1.msra.mxu0 0.0
  %546 = vmatprep.subr.mxu0 0.0
  %547 = vmatpush1.msra.mxu0 0.0
  %548 = vmatprep.subr.mxu0 0.0
  %549 = vmatpush1.msra.mxu0 0.0
  %550 = vmatprep.subr.mxu0 0.0
  %551 = vmatpush1.msra.mxu0 0.0
  %552 = vmatprep.subr.mxu0 0.0
  %553 = vmatpush1.msra.mxu0 0.0
  %554 = vmatprep.subr.mxu0 0.0
  %555 = vmatpush1.msra.mxu0 0.0
  %556 = vmatprep.subr.mxu0 0.0
  %557 = vmatpush1.msra.mxu0 0.0
  %558 = vmatprep.subr.mxu0 0.0
  %559 = vmatpush1.msra.mxu0 0.0
  %560 = vmatprep.subr.mxu0 0.0
  %561 = vmatpush1.msra.mxu0 0.0
  %562 = vmatprep.subr.mxu0 0.0
  %563 = vmatpush1.msra.mxu0 0.0
  %564 = vmatprep.mubr.f32.mxu0 0.0
  %565 = vmatmul.mubr.f32.gmra.mrb[0].mxu0 %v496
  %v566 = vpop.f32.mrb[0].mxu0
  %v567 = vadd.f32 0.0, %v566
  %v568 = vpop.f32.mrb[0].mxu0
  %569 = vmatprep.mubr.f32.mxu0 0.0
  %570 = vmatmul.mubr.f32.gmra.mrb[0].mxu0 %v497
  %v571 = vpop.f32.mrb[0].mxu0
  %v572 = vadd.f32 0.0, %v571
  %v573 = vpop.f32.mrb[0].mxu0
  %574 = vmatprep.mubr.f32.mxu0 0.0
  %575 = vmatmul.mubr.f32.gmra.mrb[0].mxu0 %v498
  %v576 = vpop.f32.mrb[0].mxu0
  %v577 = vadd.f32 0.0, %v576
  %v578 = vpop.f32.mrb[0].mxu0
  %579 = vmatprep.mubr.f32.mxu0 0.0
  %580 = vmatmul.mubr.f32.gmra.mrb[0].mxu0 %v499
  %v581 = vpop.f32.mrb[0].mxu0
  %v582 = vadd.f32 0.0, %v581
  %v583 = vpop.f32.mrb[0].mxu0
  %584 = vdwg.mxu0
  %v585 = vadd.f32 %v567, %v572
  %v586 = vadd.f32 %v585, %v577
  %v587 = vadd.f32 %v586, %v582
  %v588 = vrot.slane %v587, 4
  %v589 = vadd.f32 %v587, %v588
  %v590 = vrot.slane %v589, 2
  %v591 = vadd.f32 %v589, %v590
  %v592 = vrot.slane %v591, 1
  %v593 = vadd.f32 %v591, %v592
  %v594 = vmul.f32 %v593, 0.001953125
  %v595 = vld [vmem:[%s5] sm:$0x1]
  %v596 = vadd.f32 %v594, 1e-05
  %v597 = vrsqrt.pop %v596
  %v598 = vmul.f32 %v595, %v597
  %v600 = vlaneseq
  %v601 = vshrl.u32 %v600, 7
  %v602 = vsub.s32 0, %v601
  %v603 = vrot.slane %v598, %v602
  %v605 = vmul.f32 %v492, %v603
  %v606 = vmul.f32 %v493, %v603
  %v607 = vmul.f32 %v494, %v603
  %v608 = vmul.f32 %v495, %v603
  %v609 = vld [vmem:[%s6] sm:$0x1]
  %v611 = vlaneseq
  %v612 = vshrl.u32 %v611, 7
  %v613 = vsub.s32 0, %v612
  %v614 = vrot.slane %v609, %v613
  %v616 = vadd.f32 %v605, %v614
  %v617 = vadd.f32 %v606, %v614
  %v618 = vadd.f32 %v607, %v614
  %v619 = vadd.f32 %v608, %v614
  %v620 = vmax.f32 %v616, 0.0
  %v621 = vmax.f32 %v617, 0.0
  %v622 = vmax.f32 %v618, 0.0
  %v623 = vmax.f32 %v619, 0.0
  %624 = vst [vmem:[#allocation3] sm:$0xff] 0.0
  %625 = vst [vmem:[#allocation3 + $0x8] sm:$0xff] 0.0
  %626 = vst [vmem:[#allocation3 + $0x10] sm:$0x3] 0.0
  %627 = vst [vmem:[#allocation3 + $0x18] sm:$0xff] 0.0
  %628 = vst [vmem:[#allocation3 + $0x20] sm:$0xff] 0.0
  %629 = vst [vmem:[#allocation3 + $0x28] sm:$0x3] 0.0
  %630 = vst [vmem:[#allocation3 + $0x1] sm:$0xff] %v620
  %631 = vst [vmem:[#allocation3 + $0x9] sm:$0xff] %v621
  %632 = vst [vmem:[#allocation3 + $0x19] sm:$0xff] %v622
  %633 = vst [vmem:[#allocation3 + $0x21] sm:$0xff] %v623
  %v634 = vld [vmem:[#allocation3] sm:$0xff]
  %v635 = vld [vmem:[#allocation3 + $0x8] sm:$0xff]
  %v636 = vld [vmem:[#allocation3 + $0x18] sm:$0xff]
  %v637 = vld [vmem:[#allocation3 + $0x20] sm:$0xff]
  %v638 = vld [vmem:[%s2] sm:$0xff]
  %v639 = vld [vmem:[%s2 + $0x8] sm:$0xff]
  %v640 = vld [vmem:[%s2 + $0x10] sm:$0xff]
  %v641 = vld [vmem:[%s2 + $0x18] sm:$0xff]
  %v642 = vld [vmem:[%s2 + $0x20] sm:$0xff]
  %v643 = vld [vmem:[%s2 + $0x28] sm:$0xff]
  %v644 = vld [vmem:[%s2 + $0x30] sm:$0xff]
  %v645 = vld [vmem:[%s2 + $0x38] sm:$0xff]
  %v646 = vld [vmem:[%s2 + $0x40] sm:$0xff]
  %v647 = vld [vmem:[%s2 + $0x48] sm:$0xff]
  %v648 = vld [vmem:[%s2 + $0x50] sm:$0xff]
  %v649 = vld [vmem:[%s2 + $0x58] sm:$0xff]
  %v650 = vld [vmem:[%s2 + $0x60] sm:$0xff]
  %v651 = vld [vmem:[%s2 + $0x68] sm:$0xff]
  %v652 = vld [vmem:[%s2 + $0x70] sm:$0xff]
  %v653 = vld [vmem:[%s2 + $0x78] sm:$0xff]
  %v654 = vld [vmem:[#allocation3 + $0x1] sm:$0xff]
  %v655 = vld [vmem:[#allocation3 + $0x9] sm:$0xff]
  %v656 = vld [vmem:[#allocation3 + $0x19] sm:$0xff]
  %v657 = vld [vmem:[#allocation3 + $0x21] sm:$0xff]
  %s658 = scalar_lea.vmem %s2, 128
  %v659 = vld [vmem:[%s658] sm:$0xff]
  %v660 = vld [vmem:[%s658 + $0x8] sm:$0xff]
  %v661 = vld [vmem:[%s658 + $0x10] sm:$0xff]
  %v662 = vld [vmem:[%s658 + $0x18] sm:$0xff]
  %v663 = vld [vmem:[%s658 + $0x20] sm:$0xff]
  %v664 = vld [vmem:[%s658 + $0x28] sm:$0xff]
  %v665 = vld [vmem:[%s658 + $0x30] sm:$0xff]
  %v666 = vld [vmem:[%s658 + $0x38] sm:$0xff]
  %v667 = vld [vmem:[%s658 + $0x40] sm:$0xff]
  %v668 = vld [vmem:[%s658 + $0x48] sm:$0xff]
  %v669 = vld [vmem:[%s658 + $0x50] sm:$0xff]
  %v670 = vld [vmem:[%s658 + $0x58] sm:$0xff]
  %v671 = vld [vmem:[%s658 + $0x60] sm:$0xff]
  %v672 = vld [vmem:[%s658 + $0x68] sm:$0xff]
  %v673 = vld [vmem:[%s658 + $0x70] sm:$0xff]
  %v674 = vld [vmem:[%s658 + $0x78] sm:$0xff]
  %675 = vmatprep.subr.mxu0 0.0
  %676 = vmatpush1.msra.mxu0 %v659
  %677 = vmatprep.subr.mxu0 0.0
  %678 = vmatpush1.msra.mxu0 %v660
  %679 = vmatprep.subr.mxu0 0.0
  %680 = vmatpush1.msra.mxu0 %v661
  %681 = vmatprep.subr.mxu0 0.0
  %682 = vmatpush1.msra.mxu0 %v662
  %683 = vmatprep.subr.mxu0 0.0
  %684 = vmatpush1.msra.mxu0 %v663
  %685 = vmatprep.subr.mxu0 0.0
  %686 = vmatpush1.msra.mxu0 %v664
  %687 = vmatprep.subr.mxu0 0.0
  %688 = vmatpush1.msra.mxu0 %v665
  %689 = vmatprep.subr.mxu0 0.0
  %690 = vmatpush1.msra.mxu0 %v666
  %691 = vmatprep.subr.mxu0 0.0
  %692 = vmatpush1.msra.mxu0 %v667
  %693 = vmatprep.subr.mxu0 0.0
  %694 = vmatpush1.msra.mxu0 %v668
  %695 = vmatprep.subr.mxu0 0.0
  %696 = vmatpush1.msra.mxu0 %v669
  %697 = vmatprep.subr.mxu0 0.0
  %698 = vmatpush1.msra.mxu0 %v670
  %699 = vmatprep.subr.mxu0 0.0
  %700 = vmatpush1.msra.mxu0 %v671
  %701 = vmatprep.subr.mxu0 0.0
  %702 = vmatpush1.msra.mxu0 %v672
  %703 = vmatprep.subr.mxu0 0.0
  %704 = vmatpush1.msra.mxu0 %v673
  %705 = vmatprep.subr.mxu0 0.0
  %706 = vmatpush1.msra.mxu0 %v674
  %707 = vmatprep.subr.mxu0 0.0
  %708 = vmatpush1.msra.mxu0 0.0
  %709 = vmatprep.subr.mxu0 0.0
  %710 = vmatpush1.msra.mxu0 0.0
  %711 = vmatprep.subr.mxu0 0.0
  %712 = vmatpush1.msra.mxu0 0.0
  %713 = vmatprep.subr.mxu0 0.0
  %714 = vmatpush1.msra.mxu0 0.0
  %715 = vmatprep.subr.mxu0 0.0
  %716 = vmatpush1.msra.mxu0 0.0
  %717 = vmatprep.subr.mxu0 0.0
  %718 = vmatpush1.msra.mxu0 0.0
  %719 = vmatprep.subr.mxu0 0.0
  %720 = vmatpush1.msra.mxu0 0.0
  %721 = vmatprep.subr.mxu0 0.0
  %722 = vmatpush1.msra.mxu0 0.0
  %723 = vmatprep.subr.mxu0 0.0
  %724 = vmatpush1.msra.mxu0 0.0
  %725 = vmatprep.subr.mxu0 0.0
  %726 = vmatpush1.msra.mxu0 0.0
  %727 = vmatprep.subr.mxu0 0.0
  %728 = vmatpush1.msra.mxu0 0.0
  %729 = vmatprep.subr.mxu0 0.0
  %730 = vmatpush1.msra.mxu0 0.0
  %731 = vmatprep.subr.mxu0 0.0
  %732 = vmatpush1.msra.mxu0 0.0
  %733 = vmatprep.subr.mxu0 0.0
  %734 = vmatpush1.msra.mxu0 0.0
  %735 = vmatprep.subr.mxu0 0.0
  %736 = vmatpush1.msra.mxu0 0.0
  %737 = vmatprep.subr.mxu0 0.0
  %738 = vmatpush1.msra.mxu0 0.0
  %739 = vmatprep.mubr.f32.mxu0 0.0
  %740 = vmatmul.mubr.f32.gmra.mrb[0].mxu0 %v654
  %v741 = vpop.f32.mrb[0].mxu0
  %v742 = vadd.f32 0.0, %v741
  %v743 = vpop.f32.mrb[0].mxu0
  %744 = vmatprep.mubr.f32.mxu0 0.0
  %745 = vmatmul.mubr.f32.gmra.mrb[0].mxu0 %v655
  %v746 = vpop.f32.mrb[0].mxu0
  %v747 = vadd.f32 0.0, %v746
  %v748 = vpop.f32.mrb[0].mxu0
  %749 = vmatprep.mubr.f32.mxu0 0.0
  %750 = vmatmul.mubr.f32.gmra.mrb[0].mxu0 %v656
  %v751 = vpop.f32.mrb[0].mxu0
  %v752 = vadd.f32 0.0, %v751
  %v753 = vpop.f32.mrb[0].mxu0
  %754 = vmatprep.mubr.f32.mxu0 0.0
  %755 = vmatmul.mubr.f32.gmra.mrb[0].mxu0 %v657
  %v756 = vpop.f32.mrb[0].mxu0
  %v757 = vadd.f32 0.0, %v756
  %v758 = vpop.f32.mrb[0].mxu0
  %759 = vdwg.mxu0
  %760 = vmatprep.subr.mxu0 0.0
  %761 = vmatpush1.msra.mxu0 %v638
  %762 = vmatprep.subr.mxu0 0.0
  %763 = vmatpush1.msra.mxu0 %v639
  %764 = vmatprep.subr.mxu0 0.0
  %765 = vmatpush1.msra.mxu0 %v640
  %766 = vmatprep.subr.mxu0 0.0
  %767 = vmatpush1.msra.mxu0 %v641
  %768 = vmatprep.subr.mxu0 0.0
  %769 = vmatpush1.msra.mxu0 %v642
  %770 = vmatprep.subr.mxu0 0.0
  %771 = vmatpush1.msra.mxu0 %v643
  %772 = vmatprep.subr.mxu0 0.0
  %773 = vmatpush1.msra.mxu0 %v644
  %774 = vmatprep.subr.mxu0 0.0
  %775 = vmatpush1.msra.mxu0 %v645
  %776 = vmatprep.subr.mxu0 0.0
  %777 = vmatpush1.msra.mxu0 %v646
  %778 = vmatprep.subr.mxu0 0.0
  %779 = vmatpush1.msra.mxu0 %v647
  %780 = vmatprep.subr.mxu0 0.0
  %781 = vmatpush1.msra.mxu0 %v648
  %782 = vmatprep.subr.mxu0 0.0
  %783 = vmatpush1.msra.mxu0 %v649
  %784 = vmatprep.subr.mxu0 0.0
  %785 = vmatpush1.msra.mxu0 %v650
  %786 = vmatprep.subr.mxu0 0.0
  %787 = vmatpush1.msra.mxu0 %v651
  %788 = vmatprep.subr.mxu0 0.0
  %789 = vmatpush1.msra.mxu0 %v652
  %790 = vmatprep.subr.mxu0 0.0
  %791 = vmatpush1.msra.mxu0 %v653
  %792 = vmatprep.subr.mxu0 0.0
  %793 = vmatpush1.msra.mxu0 0.0
  %794 = vmatprep.subr.mxu0 0.0
  %795 = vmatpush1.msra.mxu0 0.0
  %796 = vmatprep.subr.mxu0 0.0
  %797 = vmatpush1.msra.mxu0 0.0
  %798 = vmatprep.subr.mxu0 0.0
  %799 = vmatpush1.msra.mxu0 0.0
  %800 = vmatprep.subr.mxu0 0.0
  %801 = vmatpush1.msra.mxu0 0.0
  %802 = vmatprep.subr.mxu0 0.0
  %803 = vmatpush1.msra.mxu0 0.0
  %804 = vmatprep.subr.mxu0 0.0
  %805 = vmatpush1.msra.mxu0 0.0
  %806 = vmatprep.subr.mxu0 0.0
  %807 = vmatpush1.msra.mxu0 0.0
  %808 = vmatprep.subr.mxu0 0.0
  %809 = vmatpush1.msra.mxu0 0.0
  %810 = vmatprep.subr.mxu0 0.0
  %811 = vmatpush1.msra.mxu0 0.0
  %812 = vmatprep.subr.mxu0 0.0
  %813 = vmatpush1.msra.mxu0 0.0
  %814 = vmatprep.subr.mxu0 0.0
  %815 = vmatpush1.msra.mxu0 0.0
  %816 = vmatprep.subr.mxu0 0.0
  %817 = vmatpush1.msra.mxu0 0.0
  %818 = vmatprep.subr.mxu0 0.0
  %819 = vmatpush1.msra.mxu0 0.0
  %820 = vmatprep.subr.mxu0 0.0
  %821 = vmatpush1.msra.mxu0 0.0
  %822 = vmatprep.subr.mxu0 0.0
  %823 = vmatpush1.msra.mxu0 0.0
  %824 = vmatprep.mubr.f32.mxu0 0.0
  %825 = vmatmul.mubr.f32.gmra.mrb[0].mxu0 %v634
  %v826 = vpop.f32.mrb[0].mxu0
  %v827 = vadd.f32 %v742, %v826
  %v828 = vpop.f32.mrb[0].mxu0
  %829 = vmatprep.mubr.f32.mxu0 0.0
  %830 = vmatmul.mubr.f32.gmra.mrb[0].mxu0 %v635
  %v831 = vpop.f32.mrb[0].mxu0
  %v832 = vadd.f32 %v747, %v831
  %v833 = vpop.f32.mrb[0].mxu0
  %834 = vmatprep.mubr.f32.mxu0 0.0
  %835 = vmatmul.mubr.f32.gmra.mrb[0].mxu0 %v636
  %v836 = vpop.f32.mrb[0].mxu0
  %v837 = vadd.f32 %v752, %v836
  %v838 = vpop.f32.mrb[0].mxu0
  %839 = vmatprep.mubr.f32.mxu0 0.0
  %840 = vmatmul.mubr.f32.gmra.mrb[0].mxu0 %v637
  %v841 = vpop.f32.mrb[0].mxu0
  %v842 = vadd.f32 %v757, %v841
  %v843 = vpop.f32.mrb[0].mxu0
  %844 = vdwg.mxu0
  %v845 = vld [vmem:[#allocation3 + $0x2] sm:$0xff]
  %v846 = vld [vmem:[#allocation3 + $0xa] sm:$0xff]
  %v847 = vld [vmem:[#allocation3 + $0x1a] sm:$0xff]
  %v848 = vld [vmem:[#allocation3 + $0x22] sm:$0xff]
  %s849 = scalar_lea.vmem %s2, 256
  %v850 = vld [vmem:[%s849] sm:$0xff]
  %v851 = vld [vmem:[%s849 + $0x8] sm:$0xff]
  %v852 = vld [vmem:[%s849 + $0x10] sm:$0xff]
  %v853 = vld [vmem:[%s849 + $0x18] sm:$0xff]
  %v854 = vld [vmem:[%s849 + $0x20] sm:$0xff]
  %v855 = vld [vmem:[%s849 + $0x28] sm:$0xff]
  %v856 = vld [vmem:[%s849 + $0x30] sm:$0xff]
  %v857 = vld [vmem:[%s849 + $0x38] sm:$0xff]
  %v858 = vld [vmem:[%s849 + $0x40] sm:$0xff]
  %v859 = vld [vmem:[%s849 + $0x48] sm:$0xff]
  %v860 = vld [vmem:[%s849 + $0x50] sm:$0xff]
  %v861 = vld [vmem:[%s849 + $0x58] sm:$0xff]
  %v862 = vld [vmem:[%s849 + $0x60] sm:$0xff]
  %v863 = vld [vmem:[%s849 + $0x68] sm:$0xff]
  %v864 = vld [vmem:[%s849 + $0x70] sm:$0xff]
  %v865 = vld [vmem:[%s849 + $0x78] sm:$0xff]
  %866 = vmatprep.subr.mxu0 0.0
  %867 = vmatpush1.msra.mxu0 %v850
  %868 = vmatprep.subr.mxu0 0.0
  %869 = vmatpush1.msra.mxu0 %v851
  %870 = vmatprep.subr.mxu0 0.0
  %871 = vmatpush1.msra.mxu0 %v852
  %872 = vmatprep.subr.mxu0 0.0
  %873 = vmatpush1.msra.mxu0 %v853
  %874 = vmatprep.subr.mxu0 0.0
  %875 = vmatpush1.msra.mxu0 %v854
  %876 = vmatprep.subr.mxu0 0.0
  %877 = vmatpush1.msra.mxu0 %v855
  %878 = vmatprep.subr.mxu0 0.0
  %879 = vmatpush1.msra.mxu0 %v856
  %880 = vmatprep.subr.mxu0 0.0
  %881 = vmatpush1.msra.mxu0 %v857
  %882 = vmatprep.subr.mxu0 0.0
  %883 = vmatpush1.msra.mxu0 %v858
  %884 = vmatprep.subr.mxu0 0.0
  %885 = vmatpush1.msra.mxu0 %v859
  %886 = vmatprep.subr.mxu0 0.0
  %887 = vmatpush1.msra.mxu0 %v860
  %888 = vmatprep.subr.mxu0 0.0
  %889 = vmatpush1.msra.mxu0 %v861
  %890 = vmatprep.subr.mxu0 0.0
  %891 = vmatpush1.msra.mxu0 %v862
  %892 = vmatprep.subr.mxu0 0.0
  %893 = vmatpush1.msra.mxu0 %v863
  %894 = vmatprep.subr.mxu0 0.0
  %895 = vmatpush1.msra.mxu0 %v864
  %896 = vmatprep.subr.mxu0 0.0
  %897 = vmatpush1.msra.mxu0 %v865
  %898 = vmatprep.subr.mxu0 0.0
  %899 = vmatpush1.msra.mxu0 0.0
  %900 = vmatprep.subr.mxu0 0.0
  %901 = vmatpush1.msra.mxu0 0.0
  %902 = vmatprep.subr.mxu0 0.0
  %903 = vmatpush1.msra.mxu0 0.0
  %904 = vmatprep.subr.mxu0 0.0
  %905 = vmatpush1.msra.mxu0 0.0
  %906 = vmatprep.subr.mxu0 0.0
  %907 = vmatpush1.msra.mxu0 0.0
  %908 = vmatprep.subr.mxu0 0.0
  %909 = vmatpush1.msra.mxu0 0.0
  %910 = vmatprep.subr.mxu0 0.0
  %911 = vmatpush1.msra.mxu0 0.0
  %912 = vmatprep.subr.mxu0 0.0
  %913 = vmatpush1.msra.mxu0 0.0
  %914 = vmatprep.subr.mxu0 0.0
  %915 = vmatpush1.msra.mxu0 0.0
  %916 = vmatprep.subr.mxu0 0.0
  %917 = vmatpush1.msra.mxu0 0.0
  %918 = vmatprep.subr.mxu0 0.0
  %919 = vmatpush1.msra.mxu0 0.0
  %920 = vmatprep.subr.mxu0 0.0
  %921 = vmatpush1.msra.mxu0 0.0
  %922 = vmatprep.subr.mxu0 0.0
  %923 = vmatpush1.msra.mxu0 0.0
  %924 = vmatprep.subr.mxu0 0.0
  %925 = vmatpush1.msra.mxu0 0.0
  %926 = vmatprep.subr.mxu0 0.0
  %927 = vmatpush1.msra.mxu0 0.0
  %928 = vmatprep.subr.mxu0 0.0
  %929 = vmatpush1.msra.mxu0 0.0
  %930 = vmatprep.mubr.f32.mxu0 0.0
  %931 = vmatmul.mubr.f32.gmra.mrb[0].mxu0 %v845
  %v932 = vpop.f32.mrb[0].mxu0
  %v933 = vadd.f32 0.0, %v932
  %v934 = vpop.f32.mrb[0].mxu0
  %935 = vmatprep.mubr.f32.mxu0 0.0
  %936 = vmatmul.mubr.f32.gmra.mrb[0].mxu0 %v846
  %v937 = vpop.f32.mrb[0].mxu0
  %v938 = vadd.f32 0.0, %v937
  %v939 = vpop.f32.mrb[0].mxu0
  %940 = vmatprep.mubr.f32.mxu0 0.0
  %941 = vmatmul.mubr.f32.gmra.mrb[0].mxu0 %v847
  %v942 = vpop.f32.mrb[0].mxu0
  %v943 = vadd.f32 0.0, %v942
  %v944 = vpop.f32.mrb[0].mxu0
  %945 = vmatprep.mubr.f32.mxu0 0.0
  %946 = vmatmul.mubr.f32.gmra.mrb[0].mxu0 %v848
  %v947 = vpop.f32.mrb[0].mxu0
  %v948 = vadd.f32 0.0, %v947
  %v949 = vpop.f32.mrb[0].mxu0
  %950 = vdwg.mxu0
  %v951 = vadd.f32 %v827, %v933
  %v952 = vadd.f32 %v832, %v938
  %v953 = vadd.f32 %v837, %v943
  %v954 = vadd.f32 %v842, %v948
  %v955 = vld [vmem:[%s4] sm:$0xff]
  %v956 = vld [vmem:[%s4 + $0x8] sm:$0xff]
  %v957 = vld [vmem:[%s4 + $0x10] sm:$0xff]
  %v958 = vld [vmem:[%s4 + $0x18] sm:$0xff]
  %v959 = vld [vmem:[%s4 + $0x20] sm:$0xff]
  %v960 = vld [vmem:[%s4 + $0x28] sm:$0xff]
  %v961 = vld [vmem:[%s4 + $0x30] sm:$0xff]
  %v962 = vld [vmem:[%s4 + $0x38] sm:$0xff]
  %v964 = vsel %vm32, %v951, 0
  %v967 = vsel %vm32, %v952, 0
  %v970 = vsel %vm32, %v953, 0
  %v973 = vsel %vm32, %v954, 0
  %975 = vmatprep.subr.mxu0 0.0
  %976 = vmatpush1.msra.mxu0 %v955
  %977 = vmatprep.subr.mxu0 0.0
  %978 = vmatpush1.msra.mxu0 %v956
  %979 = vmatprep.subr.mxu0 0.0
  %980 = vmatpush1.msra.mxu0 %v957
  %981 = vmatprep.subr.mxu0 0.0
  %982 = vmatpush1.msra.mxu0 %v958
  %983 = vmatprep.subr.mxu0 0.0
  %984 = vmatpush1.msra.mxu0 %v959
  %985 = vmatprep.subr.mxu0 0.0
  %986 = vmatpush1.msra.mxu0 %v960
  %987 = vmatprep.subr.mxu0 0.0
  %988 = vmatpush1.msra.mxu0 %v961
  %989 = vmatprep.subr.mxu0 0.0
  %990 = vmatpush1.msra.mxu0 %v962
  %991 = vmatprep.subr.mxu0 0.0
  %992 = vmatpush1.msra.mxu0 0.0
  %993 = vmatprep.subr.mxu0 0.0
  %994 = vmatpush1.msra.mxu0 0.0
  %995 = vmatprep.subr.mxu0 0.0
  %996 = vmatpush1.msra.mxu0 0.0
  %997 = vmatprep.subr.mxu0 0.0
  %998 = vmatpush1.msra.mxu0 0.0
  %999 = vmatprep.subr.mxu0 0.0
  %1000 = vmatpush1.msra.mxu0 0.0
  %1001 = vmatprep.subr.mxu0 0.0
  %1002 = vmatpush1.msra.mxu0 0.0
  %1003 = vmatprep.subr.mxu0 0.0
  %1004 = vmatpush1.msra.mxu0 0.0
  %1005 = vmatprep.subr.mxu0 0.0
  %1006 = vmatpush1.msra.mxu0 0.0
  %1007 = vmatprep.subr.mxu0 0.0
  %1008 = vmatpush1.msra.mxu0 0.0
  %1009 = vmatprep.subr.mxu0 0.0
  %1010 = vmatpush1.msra.mxu0 0.0
  %1011 = vmatprep.subr.mxu0 0.0
  %1012 = vmatpush1.msra.mxu0 0.0
  %1013 = vmatprep.subr.mxu0 0.0
  %1014 = vmatpush1.msra.mxu0 0.0
  %1015 = vmatprep.subr.mxu0 0.0
  %1016 = vmatpush1.msra.mxu0 0.0
  %1017 = vmatprep.subr.mxu0 0.0
  %1018 = vmatpush1.msra.mxu0 0.0
  %1019 = vmatprep.subr.mxu0 0.0
  %1020 = vmatpush1.msra.mxu0 0.0
  %1021 = vmatprep.subr.mxu0 0.0
  %1022 = vmatpush1.msra.mxu0 0.0
  %1023 = vmatprep.subr.mxu0 0.0
  %1024 = vmatpush1.msra.mxu0 0.0
  %1025 = vmatprep.subr.mxu0 0.0
  %1026 = vmatpush1.msra.mxu0 0.0
  %1027 = vmatprep.subr.mxu0 0.0
  %1028 = vmatpush1.msra.mxu0 0.0
  %1029 = vmatprep.subr.mxu0 0.0
  %1030 = vmatpush1.msra.mxu0 0.0
  %1031 = vmatprep.subr.mxu0 0.0
  %1032 = vmatpush1.msra.mxu0 0.0
  %1033 = vmatprep.subr.mxu0 0.0
  %1034 = vmatpush1.msra.mxu0 0.0
  %1035 = vmatprep.subr.mxu0 0.0
  %1036 = vmatpush1.msra.mxu0 0.0
  %1037 = vmatprep.subr.mxu0 0.0
  %1038 = vmatpush1.msra.mxu0 0.0
  %1039 = vmatprep.mubr.f32.mxu0 0.0
  %1040 = vmatmul.mubr.f32.gmra.mrb[0].mxu0 %v964
  %v1041 = vpop.f32.mrb[0].mxu0
  %v1042 = vadd.f32 0.0, %v1041
  %v1043 = vpop.f32.mrb[0].mxu0
  %1044 = vmatprep.mubr.f32.mxu0 0.0
  %1045 = vmatmul.mubr.f32.gmra.mrb[0].mxu0 %v967
  %v1046 = vpop.f32.mrb[0].mxu0
  %v1047 = vadd.f32 0.0, %v1046
  %v1048 = vpop.f32.mrb[0].mxu0
  %1049 = vmatprep.mubr.f32.mxu0 0.0
  %1050 = vmatmul.mubr.f32.gmra.mrb[0].mxu0 %v970
  %v1051 = vpop.f32.mrb[0].mxu0
  %v1052 = vadd.f32 0.0, %v1051
  %v1053 = vpop.f32.mrb[0].mxu0
  %1054 = vmatprep.mubr.f32.mxu0 0.0
  %1055 = vmatmul.mubr.f32.gmra.mrb[0].mxu0 %v973
  %v1056 = vpop.f32.mrb[0].mxu0
  %v1057 = vadd.f32 0.0, %v1056
  %v1058 = vpop.f32.mrb[0].mxu0
  %1059 = vdwg.mxu0
  %v1060 = vsel %vm32, %v1042, 0.0
  %v1061 = vsel %vm32, %v1047, 0.0
  %v1062 = vadd.f32 %v1060, %v1061
  %v1063 = vsel %vm32, %v1052, 0.0
  %v1064 = vadd.f32 %v1062, %v1063
  %v1065 = vsel %vm32, %v1057, 0.0
  %v1066 = vadd.f32 %v1064, %v1065
  %v1067 = vrot.slane %v1066, 4
  %v1068 = vadd.f32 %v1066, %v1067
  %v1069 = vrot.slane %v1068, 2
  %v1070 = vadd.f32 %v1068, %v1069
  %v1071 = vrot.slane %v1070, 1
  %v1072 = vadd.f32 %v1070, %v1071
  %v1073 = vmul.f32 %v1072, 0.001953125
  %v1074 = vsub.f32 %v951, %v1073
  %v1075 = vsub.f32 %v952, %v1073
  %v1076 = vsub.f32 %v953, %v1073
  %v1077 = vsub.f32 %v954, %v1073
  %v1078 = vmul.f32 %v1074, %v1074
  %v1079 = vmul.f32 %v1075, %v1075
  %v1080 = vmul.f32 %v1076, %v1076
  %v1081 = vmul.f32 %v1077, %v1077
  %v1083 = vsel %vm32, %v1078, 0
  %v1086 = vsel %vm32, %v1079, 0
  %v1089 = vsel %vm32, %v1080, 0
  %v1092 = vsel %vm32, %v1081, 0
  %1094 = vmatprep.subr.mxu0 0.0
  %1095 = vmatpush1.msra.mxu0 %v955
  %1096 = vmatprep.subr.mxu0 0.0
  %1097 = vmatpush1.msra.mxu0 %v956
  %1098 = vmatprep.subr.mxu0 0.0
  %1099 = vmatpush1.msra.mxu0 %v957
  %1100 = vmatprep.subr.mxu0 0.0
  %1101 = vmatpush1.msra.mxu0 %v958
  %1102 = vmatprep.subr.mxu0 0.0
  %1103 = vmatpush1.msra.mxu0 %v959
  %1104 = vmatprep.subr.mxu0 0.0
  %1105 = vmatpush1.msra.mxu0 %v960
  %1106 = vmatprep.subr.mxu0 0.0
  %1107 = vmatpush1.msra.mxu0 %v961
  %1108 = vmatprep.subr.mxu0 0.0
  %1109 = vmatpush1.msra.mxu0 %v962
  %1110 = vmatprep.subr.mxu0 0.0
  %1111 = vmatpush1.msra.mxu0 0.0
  %1112 = vmatprep.subr.mxu0 0.0
  %1113 = vmatpush1.msra.mxu0 0.0
  %1114 = vmatprep.subr.mxu0 0.0
  %1115 = vmatpush1.msra.mxu0 0.0
  %1116 = vmatprep.subr.mxu0 0.0
  %1117 = vmatpush1.msra.mxu0 0.0
  %1118 = vmatprep.subr.mxu0 0.0
  %1119 = vmatpush1.msra.mxu0 0.0
  %1120 = vmatprep.subr.mxu0 0.0
  %1121 = vmatpush1.msra.mxu0 0.0
  %1122 = vmatprep.subr.mxu0 0.0
  %1123 = vmatpush1.msra.mxu0 0.0
  %1124 = vmatprep.subr.mxu0 0.0
  %1125 = vmatpush1.msra.mxu0 0.0
  %1126 = vmatprep.subr.mxu0 0.0
  %1127 = vmatpush1.msra.mxu0 0.0
  %1128 = vmatprep.subr.mxu0 0.0
  %1129 = vmatpush1.msra.mxu0 0.0
  %1130 = vmatprep.subr.mxu0 0.0
  %1131 = vmatpush1.msra.mxu0 0.0
  %1132 = vmatprep.subr.mxu0 0.0
  %1133 = vmatpush1.msra.mxu0 0.0
  %1134 = vmatprep.subr.mxu0 0.0
  %1135 = vmatpush1.msra.mxu0 0.0
  %1136 = vmatprep.subr.mxu0 0.0
  %1137 = vmatpush1.msra.mxu0 0.0
  %1138 = vmatprep.subr.mxu0 0.0
  %1139 = vmatpush1.msra.mxu0 0.0
  %1140 = vmatprep.subr.mxu0 0.0
  %1141 = vmatpush1.msra.mxu0 0.0
  %1142 = vmatprep.subr.mxu0 0.0
  %1143 = vmatpush1.msra.mxu0 0.0
  %1144 = vmatprep.subr.mxu0 0.0
  %1145 = vmatpush1.msra.mxu0 0.0
  %1146 = vmatprep.subr.mxu0 0.0
  %1147 = vmatpush1.msra.mxu0 0.0
  %1148 = vmatprep.subr.mxu0 0.0
  %1149 = vmatpush1.msra.mxu0 0.0
  %1150 = vmatprep.subr.mxu0 0.0
  %1151 = vmatpush1.msra.mxu0 0.0
  %1152 = vmatprep.subr.mxu0 0.0
  %1153 = vmatpush1.msra.mxu0 0.0
  %1154 = vmatprep.subr.mxu0 0.0
  %1155 = vmatpush1.msra.mxu0 0.0
  %1156 = vmatprep.subr.mxu0 0.0
  %1157 = vmatpush1.msra.mxu0 0.0
  %1158 = vmatprep.mubr.f32.mxu0 0.0
  %1159 = vmatmul.mubr.f32.gmra.mrb[0].mxu0 %v1083
  %v1160 = vpop.f32.mrb[0].mxu0
  %v1161 = vadd.f32 0.0, %v1160
  %v1162 = vpop.f32.mrb[0].mxu0
  %1163 = vmatprep.mubr.f32.mxu0 0.0
  %1164 = vmatmul.mubr.f32.gmra.mrb[0].mxu0 %v1086
  %v1165 = vpop.f32.mrb[0].mxu0
  %v1166 = vadd.f32 0.0, %v1165
  %v1167 = vpop.f32.mrb[0].mxu0
  %1168 = vmatprep.mubr.f32.mxu0 0.0
  %1169 = vmatmul.mubr.f32.gmra.mrb[0].mxu0 %v1089
  %v1170 = vpop.f32.mrb[0].mxu0
  %v1171 = vadd.f32 0.0, %v1170
  %v1172 = vpop.f32.mrb[0].mxu0
  %1173 = vmatprep.mubr.f32.mxu0 0.0
  %1174 = vmatmul.mubr.f32.gmra.mrb[0].mxu0 %v1092
  %v1175 = vpop.f32.mrb[0].mxu0
  %v1176 = vadd.f32 0.0, %v1175
  %v1177 = vpop.f32.mrb[0].mxu0
  %1178 = vdwg.mxu0
  %v1179 = vsel %vm32, %v1161, 0.0
  %v1180 = vsel %vm32, %v1166, 0.0
  %v1181 = vadd.f32 %v1179, %v1180
  %v1182 = vsel %vm32, %v1171, 0.0
  %v1183 = vadd.f32 %v1181, %v1182
  %v1184 = vsel %vm32, %v1176, 0.0
  %v1185 = vadd.f32 %v1183, %v1184
  %v1186 = vrot.slane %v1185, 4
  %v1187 = vadd.f32 %v1185, %v1186
  %v1188 = vrot.slane %v1187, 2
  %v1189 = vadd.f32 %v1187, %v1188
  %v1190 = vrot.slane %v1189, 1
  %v1191 = vadd.f32 %v1189, %v1190
  %v1192 = vmul.f32 %v1191, 0.001953125
  %v1193 = vld [vmem:[%s7] sm:$0x1]
  %v1194 = vadd.f32 %v1192, 1e-05
  %v1195 = vrsqrt.pop %v1194
  %v1196 = vmul.f32 %v1193, %v1195
  %v1198 = vlaneseq
  %v1199 = vshrl.u32 %v1198, 7
  %v1200 = vsub.s32 0, %v1199
  %v1201 = vrot.slane %v1196, %v1200
  %v1203 = vmul.f32 %v1074, %v1201
  %v1204 = vmul.f32 %v1075, %v1201
  %v1205 = vmul.f32 %v1076, %v1201
  %v1206 = vmul.f32 %v1077, %v1201
  %v1207 = vld [vmem:[%s8] sm:$0x1]
  %v1209 = vlaneseq
  %v1210 = vshrl.u32 %v1209, 7
  %v1211 = vsub.s32 0, %v1210
  %v1212 = vrot.slane %v1207, %v1211
  %v1214 = vadd.f32 %v1203, %v1212
  %v1215 = vadd.f32 %v1204, %v1212
  %v1216 = vadd.f32 %v1205, %v1212
  %v1217 = vadd.f32 %v1206, %v1212
  %v1218 = vld [vmem:[%s0] sm:$0xff]
  %v1219 = vld [vmem:[%s0 + $0x8] sm:$0xff]
  %v1220 = vld [vmem:[%s0 + $0x10] sm:$0xff]
  %v1221 = vld [vmem:[%s0 + $0x18] sm:$0xff]
  %v1222 = vadd.f32 %v1214, %v1218
  %v1223 = vadd.f32 %v1215, %v1219
  %v1224 = vadd.f32 %v1216, %v1220
  %v1225 = vadd.f32 %v1217, %v1221
  %v1226 = vmax.f32 %v1222, 0.0
  %v1227 = vmax.f32 %v1223, 0.0
  %v1228 = vmax.f32 %v1224, 0.0
  %v1229 = vmax.f32 %v1225, 0.0
  %1230 = vst.msk [vmem:[%s9] sm:$0xff] %vm32, %v1226
  %1231 = vst.msk [vmem:[%s9 + $0x8] sm:$0xff] %vm32, %v1227
  %1232 = vst.msk [vmem:[%s9 + $0x10] sm:$0xff] %vm32, %v1228
  %1233 = vst.msk [vmem:[%s9 + $0x18] sm:$0xff] %vm32, %v1229
  // Predicated region
  $region38: #{residual_block.1} parent=0 // pred_check
    _
  $region39: #{residual_block.1} parent=0 // pred_check_branch
    %1235 = sbr.rel (0) target = $region41
  $region40: #{residual_block.1} parent=0 // pred_region
    _
  $region41: #{residual_block.1} parent=0 // pred_fallthru
    _
  // Predicated region
  $region42: #{residual_block.1} parent=0 // pred_check
    _
  $region43: #{residual_block.1} parent=0 // pred_check_branch
    %1237 = sbr.rel (0) target = $region45
  $region44: #{residual_block.1} parent=0 // pred_region
    _
  $region45: #{residual_block.1} parent=0 // pred_fallthru
    _

</llo_original>
